<compile_context>
chip_gen: v5e
topology: v5e:2x2
jax: 0.10.0
libtpu: 0.0.40
codegen_flags: <defaults>
</compile_context>

<pallas_src>
import math

import jax
import jax.numpy as jnp
import numpy as np
from jax import lax
from jax.experimental import pallas as pl
from jax.experimental.pallas import tpu as pltpu

LANE = 128
SUBLANE = 8


def _round_up(x, m):
    return ((x + m - 1) // m) * m


def gru_kernel(tok_ref, emb_ref, wih_ref, whh_ref, bi_ref, bhn_ref,
               out_ref, hN_ref, gi_ref):
    """One batch block: embedding + fused input projection + GRU recurrence.

    tok_ref : (T*Bblk, 1) int32  time-major tokens for this batch block
    emb_ref : (Vp, Hp)    bf16   zero-padded embedding table
    wih_ref : (Hp, 3*Hp)  bf16   packed W_ih^T, gate g at cols [g*Hp, g*Hp+H)
    whh_ref : (Hp, 3*Hp)  bf16   packed W_hh^T (same layout)
    bi_ref  : (1, 3*Hp)   f32    [b_ih_r+b_hh_r | b_ih_z+b_hh_z | b_ih_n]
    bhn_ref : (1, Hp)     f32    b_hh_n (must stay inside r*(...))
    out_ref : (T, Bblk, Hp) f32  hidden state at every step (time-major)
    hN_ref  : (Bblk, Hp)  f32    final hidden state
    gi_ref  : (T, Bblk, 3*Hp) f32 scratch: hoisted input projection
    """
    T, Bblk, Hp = out_ref.shape
    G3 = gi_ref.shape[-1]
    Vp = emb_ref.shape[0]
    BT = T * Bblk

    # ---- Embedding gather as a one-hot MXU matmul (kept in-kernel). ----
    tok = tok_ref[...]                                                # (BT, 1) int32
    vocab = lax.broadcasted_iota(jnp.int32, (BT, Vp), 1)
    one_hot = jnp.where(tok == vocab, 1.0, 0.0).astype(emb_ref.dtype)  # (BT, Vp)
    x = jnp.dot(one_hot, emb_ref[...], preferred_element_type=jnp.float32)
    # TODO(synk): nn.Dropout(dropout_p) is identity in eval mode; training-mode
    # dropout (RNG matched to PyTorch) is intentionally not implemented.

    # ---- Hoisted, fused input projection: ONE packed matmul, biases for the
    # r/z gates already include b_hh_r/b_hh_z (off the serial critical path). ----
    gi = jnp.dot(x.astype(wih_ref.dtype), wih_ref[...],
                 preferred_element_type=jnp.float32) + bi_ref[...]    # (BT, 3Hp) f32
    gi_ref[...] = gi.reshape(T, Bblk, G3)

    whh = whh_ref[...]                                                # loop-invariant (Hp, 3Hp)
    bhn = bhn_ref[...]                                                # (1, Hp)

    def step(t, h):
        gi_t = gi_ref[t]                                              # (Bblk, 3Hp) leading-index load
        # Single fused recurrent matmul per step (the only op on the serial path).
        gh = jnp.dot(h.astype(whh.dtype), whh,
                     preferred_element_type=jnp.float32)              # (Bblk, 3Hp)
        # Lane-aligned static gate slices (each gate block is 128-wide).
        r = jax.nn.sigmoid(gi_t[:, 0 * Hp:1 * Hp] + gh[:, 0 * Hp:1 * Hp])
        z = jax.nn.sigmoid(gi_t[:, 1 * Hp:2 * Hp] + gh[:, 1 * Hp:2 * Hp])
        n = jnp.tanh(gi_t[:, 2 * Hp:3 * Hp] + r * (gh[:, 2 * Hp:3 * Hp] + bhn))
        h_new = (1.0 - z) * n + z * h
        out_ref[t] = h_new.astype(out_ref.dtype)                      # lane-dense (Bblk,Hp) store
        return h_new

    h0 = jnp.zeros((Bblk, Hp), jnp.float32)
    unroll = True if T <= 16 else 8           # cap unroll to bound vreg live ranges
    h_last = lax.fori_loop(0, T, step, h0, unroll=unroll)
    hN_ref[...] = h_last.astype(hN_ref.dtype)


def encoder_gru_pallas(tokens, emb_w, w_ih, w_hh, b_ih, b_hh,
                       *, matmul_dtype=jnp.bfloat16):
    """tokens: (B, T) int32; PyTorch-layout GRU weights (gate order r,z,n).

    Returns (output (B,T,H) f32, h_last (B,H) f32)."""
    B, T = tokens.shape
    V, H = emb_w.shape
    f32 = jnp.float32

    Hp = _round_up(H, LANE)
    Vp = _round_up(V, LANE)
    Bblk = SUBLANE
    nb = -(-B // Bblk)                     # number of batch blocks (grid size)
    Bp = nb * Bblk

    # ---- One-time weight packing / zero-padding (weight-only transforms). ----
    def pack(w):   # (3H, H) [r;z;n] -> (Hp, 3Hp), gate g transposed at 128-aligned cols
        w = jnp.asarray(w, f32)
        p = jnp.zeros((Hp, 3 * Hp), f32)
        for g in range(3):
            p = p.at[:H, g * Hp:g * Hp + H].set(w[g * H:(g + 1) * H, :].T)
        return p.astype(matmul_dtype)

    wih_p = pack(w_ih)
    whh_p = pack(w_hh)

    b_ih = jnp.asarray(b_ih, f32)
    b_hh = jnp.asarray(b_hh, f32)
    bi = jnp.zeros((1, 3 * Hp), f32)
    gate_biases = (b_ih[0:H] + b_hh[0:H],          # r: fold b_hh_r
                   b_ih[H:2 * H] + b_hh[H:2 * H],  # z: fold b_hh_z
                   b_ih[2 * H:3 * H])              # n: b_ih_n only
    for g, val in enumerate(gate_biases):
        bi = bi.at[0, g * Hp:g * Hp + H].set(val)
    bhn = jnp.zeros((1, Hp), f32).at[0, :H].set(b_hh[2 * H:3 * H])

    emb_p = jnp.zeros((Vp, Hp), f32).at[:V, :H].set(jnp.asarray(emb_w, f32))
    emb_p = emb_p.astype(matmul_dtype)

    # ---- Tokens: pad batch, reorder to per-block time-major rows (t*Bblk + j). ----
    tok_pad = jnp.zeros((Bp, T), jnp.int32).at[:B, :].set(tokens.astype(jnp.int32))
    tok_tm = (tok_pad.reshape(nb, Bblk, T)
              .transpose(0, 2, 1)                  # (nb, T, Bblk)
              .reshape(nb, T * Bblk, 1))

    out_tm, hN = pl.pallas_call(
        gru_kernel,
        grid=(nb,),
        out_shape=(
            jax.ShapeDtypeStruct((T, Bp, Hp), f32),   # time-major output
            jax.ShapeDtypeStruct((Bp, Hp), f32),      # final hidden
        ),
        in_specs=[
            pl.BlockSpec((None, T * Bblk, 1), lambda b: (b, 0, 0)),   # tokens (per block)
            pl.BlockSpec((Vp, Hp), lambda b: (0, 0)),                 # embedding table
            pl.BlockSpec((Hp, 3 * Hp), lambda b: (0, 0)),             # packed W_ih^T
            pl.BlockSpec((Hp, 3 * Hp), lambda b: (0, 0)),             # packed W_hh^T
            pl.BlockSpec((1, 3 * Hp), lambda b: (0, 0)),              # fused r/z/n biases
            pl.BlockSpec((1, Hp), lambda b: (0, 0)),                  # b_hh_n
        ],
        out_specs=(
            pl.BlockSpec((T, Bblk, Hp), lambda b: (0, b, 0)),
            pl.BlockSpec((Bblk, Hp), lambda b: (b, 0)),
        ),
        scratch_shapes=[pltpu.VMEM((T, Bblk, 3 * Hp), f32)],
        compiler_params=pltpu.CompilerParams(
            dimension_semantics=("parallel",)),   # batch blocks are independent (v7x: 2 TCs)
    )(tok_tm, emb_p, wih_p, whh_p, bi, bhn)

    # One-time layout conversion + padding strip, off the critical path.
    output = jnp.transpose(out_tm, (1, 0, 2))[:B, :, :H]     # (B, T, H)
    h_last = hN[:B, :H]
    return output, h_last


def encoder_rnn_forward(tokens, params):
    """tokens: (B, T) int32.  Returns (output (B, T, H), hidden (1, B, H))."""
    output, h_last = encoder_gru_pallas(
        tokens, params["embedding"], params["w_ih"], params["w_hh"],
        params["b_ih"], params["b_hh"])
    hidden = h_last[None, :, :]            # (1, B, H), num_layers = 1
    return output, hidden


def gru_reference(x_bth, w_ih, w_hh, b_ih, b_hh):
    """Pure-JAX f32 reference of torch.nn.GRU (single layer, batch_first)."""
    B, T, H = x_bth.shape
    h = jnp.zeros((B, H), jnp.float32)
    outs = []
    for t in range(T):
        gi = x_bth[:, t, :] @ w_ih.T + b_ih
        gh = h @ w_hh.T + b_hh
        i_r, i_z, i_n = gi[:, :H], gi[:, H:2 * H], gi[:, 2 * H:]
        h_r, h_z, h_n = gh[:, :H], gh[:, H:2 * H], gh[:, 2 * H:]
        r = jax.nn.sigmoid(i_r + h_r)
        z = jax.nn.sigmoid(i_z + h_z)
        n = jnp.tanh(i_n + r * h_n)
        h = (1.0 - z) * n + z * h
        outs.append(h)
    return jnp.stack(outs, axis=1), h


def init_params(key, input_size, hidden_size):
    k_emb, k1, k2, k3, k4 = jax.random.split(key, 5)
    stdv = 1.0 / math.sqrt(hidden_size)
    return {
        # nn.Embedding default init: N(0, 1)
        "embedding": jax.random.normal(k_emb, (input_size, hidden_size), jnp.float32),
        # nn.GRU default init: U(-1/sqrt(H), 1/sqrt(H))
        "w_ih": jax.random.uniform(k1, (3 * hidden_size, hidden_size), jnp.float32, -stdv, stdv),
        "w_hh": jax.random.uniform(k2, (3 * hidden_size, hidden_size), jnp.float32, -stdv, stdv),
        "b_ih": jax.random.uniform(k3, (3 * hidden_size,), jnp.float32, -stdv, stdv),
        "b_hh": jax.random.uniform(k4, (3 * hidden_size,), jnp.float32, -stdv, stdv),
    }


if __name__ == "__main__":
    INPUT_SIZE = 20   # vocab size
    HIDDEN = 32
    B, T = 2, 8

    key = jax.random.PRNGKey(0)
    k_params, k_tok = jax.random.split(key)
    params = init_params(k_params, INPUT_SIZE, HIDDEN)
    tokens = jax.random.randint(k_tok, (B, T), 0, INPUT_SIZE, dtype=jnp.int32)

    output, hidden = encoder_rnn_forward(tokens, params)
    output = jax.block_until_ready(output)
    hidden = jax.block_until_ready(hidden)

    assert output.shape == (B, T, HIDDEN)
    assert hidden.shape == (1, B, HIDDEN)

    # Cross-check against a pure-JAX f32 reference.  Kernel matmul inputs are
    # bf16 (f32 accumulation / f32 gate math), so tolerance is loosened.
    embedded = params["embedding"][tokens]
    ref_out, ref_h = gru_reference(
        embedded, params["w_ih"], params["w_hh"], params["b_ih"], params["b_hh"])
    np.testing.assert_allclose(np.asarray(output), np.asarray(ref_out), atol=3e-2, rtol=3e-2)
    np.testing.assert_allclose(np.asarray(hidden[0]), np.asarray(ref_h), atol=3e-2, rtol=3e-2)

    print("KERNEL_OK")
</pallas_src>

<mosaic_0001>
module attributes {stable_mosaic.version = 11 : i64} {
  func.func @gru_kernel(%arg0: i32, %arg1: memref<1x64x1xi32, #tpu.memory_space<vmem>>, %arg2: memref<128x128xbf16, #tpu.memory_space<vmem>>, %arg3: memref<128x384xbf16, #tpu.memory_space<vmem>>, %arg4: memref<128x384xbf16, #tpu.memory_space<vmem>>, %arg5: memref<1x384xf32, #tpu.memory_space<vmem>>, %arg6: memref<1x128xf32, #tpu.memory_space<vmem>>, %arg7: memref<8x8x128xf32, #tpu.memory_space<vmem>>, %arg8: memref<8x128xf32, #tpu.memory_space<vmem>>, %arg9: memref<8x8x384xf32, #tpu.memory_space<vmem>>) attributes {dimension_semantics = [#tpu.dimension_semantics<parallel>], iteration_bounds = array<i64: 1>, scalar_prefetch = 0 : i64, scratch_operands = 1 : i64, tpu.core_type = #tpu.core_type<tc>, window_params = [{transform_indices = @transform_0, window_bounds = array<i64: 1, 64, 1>}, {pipeline_mode = #tpu.pipeline_mode<synchronous>, transform_indices = @transform_1, window_bounds = array<i64: 128, 128>}, {pipeline_mode = #tpu.pipeline_mode<synchronous>, transform_indices = @transform_2, window_bounds = array<i64: 128, 384>}, {pipeline_mode = #tpu.pipeline_mode<synchronous>, transform_indices = @transform_3, window_bounds = array<i64: 128, 384>}, {pipeline_mode = #tpu.pipeline_mode<synchronous>, transform_indices = @transform_4, window_bounds = array<i64: 1, 384>}, {pipeline_mode = #tpu.pipeline_mode<synchronous>, transform_indices = @transform_5, window_bounds = array<i64: 1, 128>}, {transform_indices = @transform_6, window_bounds = array<i64: 8, 8, 128>}, {transform_indices = @transform_7, window_bounds = array<i64: 8, 128>}]} {
    %c0 = arith.constant 0 : index
    %c0_0 = arith.constant 0 : index
    %c0_1 = arith.constant 0 : index
    %0 = vector.load %arg1[%c0, %c0_0, %c0_1] : memref<1x64x1xi32, #tpu.memory_space<vmem>>, vector<1x64x1xi32>
    %1 = vector.shape_cast %0 : vector<1x64x1xi32> to vector<64x1xi32>
    %2 = tpu.iota {dimensions = array<i32: 1>} : vector<64x128xi32>
    %3 = vector.broadcast %1 : vector<64x1xi32> to vector<64x128xi32>
    %4 = arith.cmpi eq, %3, %2 : vector<64x128xi32>
    %cst = arith.constant 1.000000e+00 : f32
    %cst_2 = arith.constant 0.000000e+00 : f32
    %5 = vector.broadcast %cst : f32 to vector<64x128xf32>
    %6 = vector.broadcast %cst_2 : f32 to vector<64x128xf32>
    %7 = arith.select %4, %5, %6 : vector<64x128xi1>, vector<64x128xf32>
    %8 = arith.truncf %7 : vector<64x128xf32> to vector<64x128xbf16>
    %c0_3 = arith.constant 0 : index
    %c0_4 = arith.constant 0 : index
    %9 = vector.load %arg2[%c0_3, %c0_4] : memref<128x128xbf16, #tpu.memory_space<vmem>>, vector<128x128xbf16>
    %cst_5 = arith.constant dense<0.000000e+00> : vector<64x128xf32>
    %10 = tpu.matmul %8, %9, %cst_5 {dimension_numbers = #tpu.dot_dimension_numbers<[1], [0], [0], [1], [0, 0, 1, 1], [], []>} : vector<64x128xbf16>, vector<128x128xbf16>, vector<64x128xf32> -> vector<64x128xf32>
    %11 = arith.truncf %10 : vector<64x128xf32> to vector<64x128xbf16>
    %c0_6 = arith.constant 0 : index
    %c0_7 = arith.constant 0 : index
    %12 = vector.load %arg3[%c0_6, %c0_7] : memref<128x384xbf16, #tpu.memory_space<vmem>>, vector<128x384xbf16>
    %cst_8 = arith.constant dense<0.000000e+00> : vector<64x384xf32>
    %13 = tpu.matmul %11, %12, %cst_8 {dimension_numbers = #tpu.dot_dimension_numbers<[1], [0], [0], [1], [0, 0, 1, 1], [], []>} : vector<64x128xbf16>, vector<128x384xbf16>, vector<64x384xf32> -> vector<64x384xf32>
    %c0_9 = arith.constant 0 : index
    %c0_10 = arith.constant 0 : index
    %14 = vector.load %arg5[%c0_9, %c0_10] : memref<1x384xf32, #tpu.memory_space<vmem>>, vector<1x384xf32>
    %15 = vector.broadcast %14 : vector<1x384xf32> to vector<64x384xf32>
    %16 = arith.addf %13, %15 : vector<64x384xf32>
    %17 = vector.shape_cast %16 : vector<64x384xf32> to vector<8x8x384xf32>
    %c0_11 = arith.constant 0 : index
    %c0_12 = arith.constant 0 : index
    %c0_13 = arith.constant 0 : index
    %18 = vector.load %arg9[%c0_11, %c0_12, %c0_13] : memref<8x8x384xf32, #tpu.memory_space<vmem>>, vector<8x8x384xf32>
    tpu.vector_store %arg9[%c0_11, %c0_12, %c0_13], %17 {strides = array<i32>} : memref<8x8x384xf32, #tpu.memory_space<vmem>>, vector<8x8x384xf32>,
    %c0_14 = arith.constant 0 : index
    %c0_15 = arith.constant 0 : index
    %19 = vector.load %arg4[%c0_14, %c0_15] : memref<128x384xbf16, #tpu.memory_space<vmem>>, vector<128x384xbf16>
    %c0_16 = arith.constant 0 : index
    %c0_17 = arith.constant 0 : index
    %20 = vector.load %arg6[%c0_16, %c0_17] : memref<1x128xf32, #tpu.memory_space<vmem>>, vector<1x128xf32>
    %cst_18 = arith.constant 0.000000e+00 : f32
    %21 = vector.broadcast %cst_18 : f32 to vector<8x128xf32>
    %c0_i32 = arith.constant 0 : i32
    %22 = arith.index_cast %c0_i32 : i32 to index
    %c0_19 = arith.constant 0 : index
    %c0_20 = arith.constant 0 : index
    %23 = vector.load %arg9[%22, %c0_19, %c0_20] : memref<8x8x384xf32, #tpu.memory_space<vmem>>, vector<1x8x384xf32>
    %24 = vector.shape_cast %23 : vector<1x8x384xf32> to vector<8x384xf32>
    %25 = arith.truncf %21 : vector<8x128xf32> to vector<8x128xbf16>
    %cst_21 = arith.constant dense<0.000000e+00> : vector<8x384xf32>
    %26 = tpu.matmul %25, %19, %cst_21 {dimension_numbers = #tpu.dot_dimension_numbers<[1], [0], [0], [1], [0, 0, 1, 1], [], []>} : vector<8x128xbf16>, vector<128x384xbf16>, vector<8x384xf32> -> vector<8x384xf32>
    %27 = vector.extract_strided_slice %24 {offsets = [0, 0], sizes = [8, 128], strides = [1, 1]} : vector<8x384xf32> to vector<8x128xf32>
    %28 = vector.extract_strided_slice %26 {offsets = [0, 0], sizes = [8, 128], strides = [1, 1]} : vector<8x384xf32> to vector<8x128xf32>
    %29 = arith.addf %27, %28 : vector<8x128xf32>
    %30 = arith.negf %29 : vector<8x128xf32>
    %31 = math.exp %30 : vector<8x128xf32>
    %cst_22 = arith.constant 1.000000e+00 : f32
    %32 = vector.broadcast %cst_22 : f32 to vector<8x128xf32>
    %33 = arith.addf %32, %31 : vector<8x128xf32>
    %34 = arith.divf %32, %33 : vector<8x128xf32>
    %35 = vector.extract_strided_slice %24 {offsets = [0, 128], sizes = [8, 128], strides = [1, 1]} : vector<8x384xf32> to vector<8x128xf32>
    %36 = vector.extract_strided_slice %26 {offsets = [0, 128], sizes = [8, 128], strides = [1, 1]} : vector<8x384xf32> to vector<8x128xf32>
    %37 = arith.addf %35, %36 : vector<8x128xf32>
    %38 = arith.negf %37 : vector<8x128xf32>
    %39 = math.exp %38 : vector<8x128xf32>
    %cst_23 = arith.constant 1.000000e+00 : f32
    %40 = vector.broadcast %cst_23 : f32 to vector<8x128xf32>
    %41 = arith.addf %40, %39 : vector<8x128xf32>
    %42 = arith.divf %40, %41 : vector<8x128xf32>
    %43 = vector.extract_strided_slice %24 {offsets = [0, 256], sizes = [8, 128], strides = [1, 1]} : vector<8x384xf32> to vector<8x128xf32>
    %44 = vector.extract_strided_slice %26 {offsets = [0, 256], sizes = [8, 128], strides = [1, 1]} : vector<8x384xf32> to vector<8x128xf32>
    %45 = vector.broadcast %20 : vector<1x128xf32> to vector<8x128xf32>
    %46 = arith.addf %44, %45 : vector<8x128xf32>
    %47 = arith.mulf %34, %46 : vector<8x128xf32>
    %48 = arith.addf %43, %47 : vector<8x128xf32>
    %49 = math.tanh %48 : vector<8x128xf32>
    %cst_24 = arith.constant 1.000000e+00 : f32
    %50 = vector.broadcast %cst_24 : f32 to vector<8x128xf32>
    %51 = arith.subf %50, %42 : vector<8x128xf32>
    %52 = arith.mulf %51, %49 : vector<8x128xf32>
    %53 = arith.mulf %42, %21 : vector<8x128xf32>
    %54 = arith.addf %52, %53 : vector<8x128xf32>
    %55 = arith.index_cast %c0_i32 : i32 to index
    %c0_25 = arith.constant 0 : index
    %c0_26 = arith.constant 0 : index
    %56 = vector.load %arg7[%55, %c0_25, %c0_26] : memref<8x8x128xf32, #tpu.memory_space<vmem>>, vector<1x8x128xf32>
    %57 = vector.shape_cast %56 : vector<1x8x128xf32> to vector<8x128xf32>
    %58 = vector.shape_cast %54 : vector<8x128xf32> to vector<1x8x128xf32>
    tpu.vector_store %arg7[%55, %c0_25, %c0_26], %58 {strides = array<i32>} : memref<8x8x128xf32, #tpu.memory_space<vmem>>, vector<1x8x128xf32>,
    %c1_i32 = arith.constant 1 : i32
    %59 = arith.index_cast %c1_i32 : i32 to index
    %c0_27 = arith.constant 0 : index
    %c0_28 = arith.constant 0 : index
    %60 = vector.load %arg9[%59, %c0_27, %c0_28] : memref<8x8x384xf32, #tpu.memory_space<vmem>>, vector<1x8x384xf32>
    %61 = vector.shape_cast %60 : vector<1x8x384xf32> to vector<8x384xf32>
    %62 = arith.truncf %54 : vector<8x128xf32> to vector<8x128xbf16>
    %cst_29 = arith.constant dense<0.000000e+00> : vector<8x384xf32>
    %63 = tpu.matmul %62, %19, %cst_29 {dimension_numbers = #tpu.dot_dimension_numbers<[1], [0], [0], [1], [0, 0, 1, 1], [], []>} : vector<8x128xbf16>, vector<128x384xbf16>, vector<8x384xf32> -> vector<8x384xf32>
    %64 = vector.extract_strided_slice %61 {offsets = [0, 0], sizes = [8, 128], strides = [1, 1]} : vector<8x384xf32> to vector<8x128xf32>
    %65 = vector.extract_strided_slice %63 {offsets = [0, 0], sizes = [8, 128], strides = [1, 1]} : vector<8x384xf32> to vector<8x128xf32>
    %66 = arith.addf %64, %65 : vector<8x128xf32>
    %67 = arith.negf %66 : vector<8x128xf32>
    %68 = math.exp %67 : vector<8x128xf32>
    %cst_30 = arith.constant 1.000000e+00 : f32
    %69 = vector.broadcast %cst_30 : f32 to vector<8x128xf32>
    %70 = arith.addf %69, %68 : vector<8x128xf32>
    %71 = arith.divf %69, %70 : vector<8x128xf32>
    %72 = vector.extract_strided_slice %61 {offsets = [0, 128], sizes = [8, 128], strides = [1, 1]} : vector<8x384xf32> to vector<8x128xf32>
    %73 = vector.extract_strided_slice %63 {offsets = [0, 128], sizes = [8, 128], strides = [1, 1]} : vector<8x384xf32> to vector<8x128xf32>
    %74 = arith.addf %72, %73 : vector<8x128xf32>
    %75 = arith.negf %74 : vector<8x128xf32>
    %76 = math.exp %75 : vector<8x128xf32>
    %cst_31 = arith.constant 1.000000e+00 : f32
    %77 = vector.broadcast %cst_31 : f32 to vector<8x128xf32>
    %78 = arith.addf %77, %76 : vector<8x128xf32>
    %79 = arith.divf %77, %78 : vector<8x128xf32>
    %80 = vector.extract_strided_slice %61 {offsets = [0, 256], sizes = [8, 128], strides = [1, 1]} : vector<8x384xf32> to vector<8x128xf32>
    %81 = vector.extract_strided_slice %63 {offsets = [0, 256], sizes = [8, 128], strides = [1, 1]} : vector<8x384xf32> to vector<8x128xf32>
    %82 = vector.broadcast %20 : vector<1x128xf32> to vector<8x128xf32>
    %83 = arith.addf %81, %82 : vector<8x128xf32>
    %84 = arith.mulf %71, %83 : vector<8x128xf32>
    %85 = arith.addf %80, %84 : vector<8x128xf32>
    %86 = math.tanh %85 : vector<8x128xf32>
    %cst_32 = arith.constant 1.000000e+00 : f32
    %87 = vector.broadcast %cst_32 : f32 to vector<8x128xf32>
    %88 = arith.subf %87, %79 : vector<8x128xf32>
    %89 = arith.mulf %88, %86 : vector<8x128xf32>
    %90 = arith.mulf %79, %54 : vector<8x128xf32>
    %91 = arith.addf %89, %90 : vector<8x128xf32>
    %92 = arith.index_cast %c1_i32 : i32 to index
    %c0_33 = arith.constant 0 : index
    %c0_34 = arith.constant 0 : index
    %93 = vector.load %arg7[%92, %c0_33, %c0_34] : memref<8x8x128xf32, #tpu.memory_space<vmem>>, vector<1x8x128xf32>
    %94 = vector.shape_cast %93 : vector<1x8x128xf32> to vector<8x128xf32>
    %95 = vector.shape_cast %91 : vector<8x128xf32> to vector<1x8x128xf32>
    tpu.vector_store %arg7[%92, %c0_33, %c0_34], %95 {strides = array<i32>} : memref<8x8x128xf32, #tpu.memory_space<vmem>>, vector<1x8x128xf32>,
    %c2_i32 = arith.constant 2 : i32
    %96 = arith.index_cast %c2_i32 : i32 to index
    %c0_35 = arith.constant 0 : index
    %c0_36 = arith.constant 0 : index
    %97 = vector.load %arg9[%96, %c0_35, %c0_36] : memref<8x8x384xf32, #tpu.memory_space<vmem>>, vector<1x8x384xf32>
    %98 = vector.shape_cast %97 : vector<1x8x384xf32> to vector<8x384xf32>
    %99 = arith.truncf %91 : vector<8x128xf32> to vector<8x128xbf16>
    %cst_37 = arith.constant dense<0.000000e+00> : vector<8x384xf32>
    %100 = tpu.matmul %99, %19, %cst_37 {dimension_numbers = #tpu.dot_dimension_numbers<[1], [0], [0], [1], [0, 0, 1, 1], [], []>} : vector<8x128xbf16>, vector<128x384xbf16>, vector<8x384xf32> -> vector<8x384xf32>
    %101 = vector.extract_strided_slice %98 {offsets = [0, 0], sizes = [8, 128], strides = [1, 1]} : vector<8x384xf32> to vector<8x128xf32>
    %102 = vector.extract_strided_slice %100 {offsets = [0, 0], sizes = [8, 128], strides = [1, 1]} : vector<8x384xf32> to vector<8x128xf32>
    %103 = arith.addf %101, %102 : vector<8x128xf32>
    %104 = arith.negf %103 : vector<8x128xf32>
    %105 = math.exp %104 : vector<8x128xf32>
    %cst_38 = arith.constant 1.000000e+00 : f32
    %106 = vector.broadcast %cst_38 : f32 to vector<8x128xf32>
    %107 = arith.addf %106, %105 : vector<8x128xf32>
    %108 = arith.divf %106, %107 : vector<8x128xf32>
    %109 = vector.extract_strided_slice %98 {offsets = [0, 128], sizes = [8, 128], strides = [1, 1]} : vector<8x384xf32> to vector<8x128xf32>
    %110 = vector.extract_strided_slice %100 {offsets = [0, 128], sizes = [8, 128], strides = [1, 1]} : vector<8x384xf32> to vector<8x128xf32>
    %111 = arith.addf %109, %110 : vector<8x128xf32>
    %112 = arith.negf %111 : vector<8x128xf32>
    %113 = math.exp %112 : vector<8x128xf32>
    %cst_39 = arith.constant 1.000000e+00 : f32
    %114 = vector.broadcast %cst_39 : f32 to vector<8x128xf32>
    %115 = arith.addf %114, %113 : vector<8x128xf32>
    %116 = arith.divf %114, %115 : vector<8x128xf32>
    %117 = vector.extract_strided_slice %98 {offsets = [0, 256], sizes = [8, 128], strides = [1, 1]} : vector<8x384xf32> to vector<8x128xf32>
    %118 = vector.extract_strided_slice %100 {offsets = [0, 256], sizes = [8, 128], strides = [1, 1]} : vector<8x384xf32> to vector<8x128xf32>
    %119 = vector.broadcast %20 : vector<1x128xf32> to vector<8x128xf32>
    %120 = arith.addf %118, %119 : vector<8x128xf32>
    %121 = arith.mulf %108, %120 : vector<8x128xf32>
    %122 = arith.addf %117, %121 : vector<8x128xf32>
    %123 = math.tanh %122 : vector<8x128xf32>
    %cst_40 = arith.constant 1.000000e+00 : f32
    %124 = vector.broadcast %cst_40 : f32 to vector<8x128xf32>
    %125 = arith.subf %124, %116 : vector<8x128xf32>
    %126 = arith.mulf %125, %123 : vector<8x128xf32>
    %127 = arith.mulf %116, %91 : vector<8x128xf32>
    %128 = arith.addf %126, %127 : vector<8x128xf32>
    %129 = arith.index_cast %c2_i32 : i32 to index
    %c0_41 = arith.constant 0 : index
    %c0_42 = arith.constant 0 : index
    %130 = vector.load %arg7[%129, %c0_41, %c0_42] : memref<8x8x128xf32, #tpu.memory_space<vmem>>, vector<1x8x128xf32>
    %131 = vector.shape_cast %130 : vector<1x8x128xf32> to vector<8x128xf32>
    %132 = vector.shape_cast %128 : vector<8x128xf32> to vector<1x8x128xf32>
    tpu.vector_store %arg7[%129, %c0_41, %c0_42], %132 {strides = array<i32>} : memref<8x8x128xf32, #tpu.memory_space<vmem>>, vector<1x8x128xf32>,
    %c3_i32 = arith.constant 3 : i32
    %133 = arith.index_cast %c3_i32 : i32 to index
    %c0_43 = arith.constant 0 : index
    %c0_44 = arith.constant 0 : index
    %134 = vector.load %arg9[%133, %c0_43, %c0_44] : memref<8x8x384xf32, #tpu.memory_space<vmem>>, vector<1x8x384xf32>
    %135 = vector.shape_cast %134 : vector<1x8x384xf32> to vector<8x384xf32>
    %136 = arith.truncf %128 : vector<8x128xf32> to vector<8x128xbf16>
    %cst_45 = arith.constant dense<0.000000e+00> : vector<8x384xf32>
    %137 = tpu.matmul %136, %19, %cst_45 {dimension_numbers = #tpu.dot_dimension_numbers<[1], [0], [0], [1], [0, 0, 1, 1], [], []>} : vector<8x128xbf16>, vector<128x384xbf16>, vector<8x384xf32> -> vector<8x384xf32>
    %138 = vector.extract_strided_slice %135 {offsets = [0, 0], sizes = [8, 128], strides = [1, 1]} : vector<8x384xf32> to vector<8x128xf32>
    %139 = vector.extract_strided_slice %137 {offsets = [0, 0], sizes = [8, 128], strides = [1, 1]} : vector<8x384xf32> to vector<8x128xf32>
    %140 = arith.addf %138, %139 : vector<8x128xf32>
    %141 = arith.negf %140 : vector<8x128xf32>
    %142 = math.exp %141 : vector<8x128xf32>
    %cst_46 = arith.constant 1.000000e+00 : f32
    %143 = vector.broadcast %cst_46 : f32 to vector<8x128xf32>
    %144 = arith.addf %143, %142 : vector<8x128xf32>
    %145 = arith.divf %143, %144 : vector<8x128xf32>
    %146 = vector.extract_strided_slice %135 {offsets = [0, 128], sizes = [8, 128], strides = [1, 1]} : vector<8x384xf32> to vector<8x128xf32>
    %147 = vector.extract_strided_slice %137 {offsets = [0, 128], sizes = [8, 128], strides = [1, 1]} : vector<8x384xf32> to vector<8x128xf32>
    %148 = arith.addf %146, %147 : vector<8x128xf32>
    %149 = arith.negf %148 : vector<8x128xf32>
    %150 = math.exp %149 : vector<8x128xf32>
    %cst_47 = arith.constant 1.000000e+00 : f32
    %151 = vector.broadcast %cst_47 : f32 to vector<8x128xf32>
    %152 = arith.addf %151, %150 : vector<8x128xf32>
    %153 = arith.divf %151, %152 : vector<8x128xf32>
    %154 = vector.extract_strided_slice %135 {offsets = [0, 256], sizes = [8, 128], strides = [1, 1]} : vector<8x384xf32> to vector<8x128xf32>
    %155 = vector.extract_strided_slice %137 {offsets = [0, 256], sizes = [8, 128], strides = [1, 1]} : vector<8x384xf32> to vector<8x128xf32>
    %156 = vector.broadcast %20 : vector<1x128xf32> to vector<8x128xf32>
    %157 = arith.addf %155, %156 : vector<8x128xf32>
    %158 = arith.mulf %145, %157 : vector<8x128xf32>
    %159 = arith.addf %154, %158 : vector<8x128xf32>
    %160 = math.tanh %159 : vector<8x128xf32>
    %cst_48 = arith.constant 1.000000e+00 : f32
    %161 = vector.broadcast %cst_48 : f32 to vector<8x128xf32>
    %162 = arith.subf %161, %153 : vector<8x128xf32>
    %163 = arith.mulf %162, %160 : vector<8x128xf32>
    %164 = arith.mulf %153, %128 : vector<8x128xf32>
    %165 = arith.addf %163, %164 : vector<8x128xf32>
    %166 = arith.index_cast %c3_i32 : i32 to index
    %c0_49 = arith.constant 0 : index
    %c0_50 = arith.constant 0 : index
    %167 = vector.load %arg7[%166, %c0_49, %c0_50] : memref<8x8x128xf32, #tpu.memory_space<vmem>>, vector<1x8x128xf32>
    %168 = vector.shape_cast %167 : vector<1x8x128xf32> to vector<8x128xf32>
    %169 = vector.shape_cast %165 : vector<8x128xf32> to vector<1x8x128xf32>
    tpu.vector_store %arg7[%166, %c0_49, %c0_50], %169 {strides = array<i32>} : memref<8x8x128xf32, #tpu.memory_space<vmem>>, vector<1x8x128xf32>,
    %c4_i32 = arith.constant 4 : i32
    %170 = arith.index_cast %c4_i32 : i32 to index
    %c0_51 = arith.constant 0 : index
    %c0_52 = arith.constant 0 : index
    %171 = vector.load %arg9[%170, %c0_51, %c0_52] : memref<8x8x384xf32, #tpu.memory_space<vmem>>, vector<1x8x384xf32>
    %172 = vector.shape_cast %171 : vector<1x8x384xf32> to vector<8x384xf32>
    %173 = arith.truncf %165 : vector<8x128xf32> to vector<8x128xbf16>
    %cst_53 = arith.constant dense<0.000000e+00> : vector<8x384xf32>
    %174 = tpu.matmul %173, %19, %cst_53 {dimension_numbers = #tpu.dot_dimension_numbers<[1], [0], [0], [1], [0, 0, 1, 1], [], []>} : vector<8x128xbf16>, vector<128x384xbf16>, vector<8x384xf32> -> vector<8x384xf32>
    %175 = vector.extract_strided_slice %172 {offsets = [0, 0], sizes = [8, 128], strides = [1, 1]} : vector<8x384xf32> to vector<8x128xf32>
    %176 = vector.extract_strided_slice %174 {offsets = [0, 0], sizes = [8, 128], strides = [1, 1]} : vector<8x384xf32> to vector<8x128xf32>
    %177 = arith.addf %175, %176 : vector<8x128xf32>
    %178 = arith.negf %177 : vector<8x128xf32>
    %179 = math.exp %178 : vector<8x128xf32>
    %cst_54 = arith.constant 1.000000e+00 : f32
    %180 = vector.broadcast %cst_54 : f32 to vector<8x128xf32>
    %181 = arith.addf %180, %179 : vector<8x128xf32>
    %182 = arith.divf %180, %181 : vector<8x128xf32>
    %183 = vector.extract_strided_slice %172 {offsets = [0, 128], sizes = [8, 128], strides = [1, 1]} : vector<8x384xf32> to vector<8x128xf32>
    %184 = vector.extract_strided_slice %174 {offsets = [0, 128], sizes = [8, 128], strides = [1, 1]} : vector<8x384xf32> to vector<8x128xf32>
    %185 = arith.addf %183, %184 : vector<8x128xf32>
    %186 = arith.negf %185 : vector<8x128xf32>
    %187 = math.exp %186 : vector<8x128xf32>
    %cst_55 = arith.constant 1.000000e+00 : f32
    %188 = vector.broadcast %cst_55 : f32 to vector<8x128xf32>
    %189 = arith.addf %188, %187 : vector<8x128xf32>
    %190 = arith.divf %188, %189 : vector<8x128xf32>
    %191 = vector.extract_strided_slice %172 {offsets = [0, 256], sizes = [8, 128], strides = [1, 1]} : vector<8x384xf32> to vector<8x128xf32>
    %192 = vector.extract_strided_slice %174 {offsets = [0, 256], sizes = [8, 128], strides = [1, 1]} : vector<8x384xf32> to vector<8x128xf32>
    %193 = vector.broadcast %20 : vector<1x128xf32> to vector<8x128xf32>
    %194 = arith.addf %192, %193 : vector<8x128xf32>
    %195 = arith.mulf %182, %194 : vector<8x128xf32>
    %196 = arith.addf %191, %195 : vector<8x128xf32>
    %197 = math.tanh %196 : vector<8x128xf32>
    %cst_56 = arith.constant 1.000000e+00 : f32
    %198 = vector.broadcast %cst_56 : f32 to vector<8x128xf32>
    %199 = arith.subf %198, %190 : vector<8x128xf32>
    %200 = arith.mulf %199, %197 : vector<8x128xf32>
    %201 = arith.mulf %190, %165 : vector<8x128xf32>
    %202 = arith.addf %200, %201 : vector<8x128xf32>
    %203 = arith.index_cast %c4_i32 : i32 to index
    %c0_57 = arith.constant 0 : index
    %c0_58 = arith.constant 0 : index
    %204 = vector.load %arg7[%203, %c0_57, %c0_58] : memref<8x8x128xf32, #tpu.memory_space<vmem>>, vector<1x8x128xf32>
    %205 = vector.shape_cast %204 : vector<1x8x128xf32> to vector<8x128xf32>
    %206 = vector.shape_cast %202 : vector<8x128xf32> to vector<1x8x128xf32>
    tpu.vector_store %arg7[%203, %c0_57, %c0_58], %206 {strides = array<i32>} : memref<8x8x128xf32, #tpu.memory_space<vmem>>, vector<1x8x128xf32>,
    %c5_i32 = arith.constant 5 : i32
    %207 = arith.index_cast %c5_i32 : i32 to index
    %c0_59 = arith.constant 0 : index
    %c0_60 = arith.constant 0 : index
    %208 = vector.load %arg9[%207, %c0_59, %c0_60] : memref<8x8x384xf32, #tpu.memory_space<vmem>>, vector<1x8x384xf32>
    %209 = vector.shape_cast %208 : vector<1x8x384xf32> to vector<8x384xf32>
    %210 = arith.truncf %202 : vector<8x128xf32> to vector<8x128xbf16>
    %cst_61 = arith.constant dense<0.000000e+00> : vector<8x384xf32>
    %211 = tpu.matmul %210, %19, %cst_61 {dimension_numbers = #tpu.dot_dimension_numbers<[1], [0], [0], [1], [0, 0, 1, 1], [], []>} : vector<8x128xbf16>, vector<128x384xbf16>, vector<8x384xf32> -> vector<8x384xf32>
    %212 = vector.extract_strided_slice %209 {offsets = [0, 0], sizes = [8, 128], strides = [1, 1]} : vector<8x384xf32> to vector<8x128xf32>
    %213 = vector.extract_strided_slice %211 {offsets = [0, 0], sizes = [8, 128], strides = [1, 1]} : vector<8x384xf32> to vector<8x128xf32>
    %214 = arith.addf %212, %213 : vector<8x128xf32>
    %215 = arith.negf %214 : vector<8x128xf32>
    %216 = math.exp %215 : vector<8x128xf32>
    %cst_62 = arith.constant 1.000000e+00 : f32
    %217 = vector.broadcast %cst_62 : f32 to vector<8x128xf32>
    %218 = arith.addf %217, %216 : vector<8x128xf32>
    %219 = arith.divf %217, %218 : vector<8x128xf32>
    %220 = vector.extract_strided_slice %209 {offsets = [0, 128], sizes = [8, 128], strides = [1, 1]} : vector<8x384xf32> to vector<8x128xf32>
    %221 = vector.extract_strided_slice %211 {offsets = [0, 128], sizes = [8, 128], strides = [1, 1]} : vector<8x384xf32> to vector<8x128xf32>
    %222 = arith.addf %220, %221 : vector<8x128xf32>
    %223 = arith.negf %222 : vector<8x128xf32>
    %224 = math.exp %223 : vector<8x128xf32>
    %cst_63 = arith.constant 1.000000e+00 : f32
    %225 = vector.broadcast %cst_63 : f32 to vector<8x128xf32>
    %226 = arith.addf %225, %224 : vector<8x128xf32>
    %227 = arith.divf %225, %226 : vector<8x128xf32>
    %228 = vector.extract_strided_slice %209 {offsets = [0, 256], sizes = [8, 128], strides = [1, 1]} : vector<8x384xf32> to vector<8x128xf32>
    %229 = vector.extract_strided_slice %211 {offsets = [0, 256], sizes = [8, 128], strides = [1, 1]} : vector<8x384xf32> to vector<8x128xf32>
    %230 = vector.broadcast %20 : vector<1x128xf32> to vector<8x128xf32>
    %231 = arith.addf %229, %230 : vector<8x128xf32>
    %232 = arith.mulf %219, %231 : vector<8x128xf32>
    %233 = arith.addf %228, %232 : vector<8x128xf32>
    %234 = math.tanh %233 : vector<8x128xf32>
    %cst_64 = arith.constant 1.000000e+00 : f32
    %235 = vector.broadcast %cst_64 : f32 to vector<8x128xf32>
    %236 = arith.subf %235, %227 : vector<8x128xf32>
    %237 = arith.mulf %236, %234 : vector<8x128xf32>
    %238 = arith.mulf %227, %202 : vector<8x128xf32>
    %239 = arith.addf %237, %238 : vector<8x128xf32>
    %240 = arith.index_cast %c5_i32 : i32 to index
    %c0_65 = arith.constant 0 : index
    %c0_66 = arith.constant 0 : index
    %241 = vector.load %arg7[%240, %c0_65, %c0_66] : memref<8x8x128xf32, #tpu.memory_space<vmem>>, vector<1x8x128xf32>
    %242 = vector.shape_cast %241 : vector<1x8x128xf32> to vector<8x128xf32>
    %243 = vector.shape_cast %239 : vector<8x128xf32> to vector<1x8x128xf32>
    tpu.vector_store %arg7[%240, %c0_65, %c0_66], %243 {strides = array<i32>} : memref<8x8x128xf32, #tpu.memory_space<vmem>>, vector<1x8x128xf32>,
    %c6_i32 = arith.constant 6 : i32
    %244 = arith.index_cast %c6_i32 : i32 to index
    %c0_67 = arith.constant 0 : index
    %c0_68 = arith.constant 0 : index
    %245 = vector.load %arg9[%244, %c0_67, %c0_68] : memref<8x8x384xf32, #tpu.memory_space<vmem>>, vector<1x8x384xf32>
    %246 = vector.shape_cast %245 : vector<1x8x384xf32> to vector<8x384xf32>
    %247 = arith.truncf %239 : vector<8x128xf32> to vector<8x128xbf16>
    %cst_69 = arith.constant dense<0.000000e+00> : vector<8x384xf32>
    %248 = tpu.matmul %247, %19, %cst_69 {dimension_numbers = #tpu.dot_dimension_numbers<[1], [0], [0], [1], [0, 0, 1, 1], [], []>} : vector<8x128xbf16>, vector<128x384xbf16>, vector<8x384xf32> -> vector<8x384xf32>
    %249 = vector.extract_strided_slice %246 {offsets = [0, 0], sizes = [8, 128], strides = [1, 1]} : vector<8x384xf32> to vector<8x128xf32>
    %250 = vector.extract_strided_slice %248 {offsets = [0, 0], sizes = [8, 128], strides = [1, 1]} : vector<8x384xf32> to vector<8x128xf32>
    %251 = arith.addf %249, %250 : vector<8x128xf32>
    %252 = arith.negf %251 : vector<8x128xf32>
    %253 = math.exp %252 : vector<8x128xf32>
    %cst_70 = arith.constant 1.000000e+00 : f32
    %254 = vector.broadcast %cst_70 : f32 to vector<8x128xf32>
    %255 = arith.addf %254, %253 : vector<8x128xf32>
    %256 = arith.divf %254, %255 : vector<8x128xf32>
    %257 = vector.extract_strided_slice %246 {offsets = [0, 128], sizes = [8, 128], strides = [1, 1]} : vector<8x384xf32> to vector<8x128xf32>
    %258 = vector.extract_strided_slice %248 {offsets = [0, 128], sizes = [8, 128], strides = [1, 1]} : vector<8x384xf32> to vector<8x128xf32>
    %259 = arith.addf %257, %258 : vector<8x128xf32>
    %260 = arith.negf %259 : vector<8x128xf32>
    %261 = math.exp %260 : vector<8x128xf32>
    %cst_71 = arith.constant 1.000000e+00 : f32
    %262 = vector.broadcast %cst_71 : f32 to vector<8x128xf32>
    %263 = arith.addf %262, %261 : vector<8x128xf32>
    %264 = arith.divf %262, %263 : vector<8x128xf32>
    %265 = vector.extract_strided_slice %246 {offsets = [0, 256], sizes = [8, 128], strides = [1, 1]} : vector<8x384xf32> to vector<8x128xf32>
    %266 = vector.extract_strided_slice %248 {offsets = [0, 256], sizes = [8, 128], strides = [1, 1]} : vector<8x384xf32> to vector<8x128xf32>
    %267 = vector.broadcast %20 : vector<1x128xf32> to vector<8x128xf32>
    %268 = arith.addf %266, %267 : vector<8x128xf32>
    %269 = arith.mulf %256, %268 : vector<8x128xf32>
    %270 = arith.addf %265, %269 : vector<8x128xf32>
    %271 = math.tanh %270 : vector<8x128xf32>
    %cst_72 = arith.constant 1.000000e+00 : f32
    %272 = vector.broadcast %cst_72 : f32 to vector<8x128xf32>
    %273 = arith.subf %272, %264 : vector<8x128xf32>
    %274 = arith.mulf %273, %271 : vector<8x128xf32>
    %275 = arith.mulf %264, %239 : vector<8x128xf32>
    %276 = arith.addf %274, %275 : vector<8x128xf32>
    %277 = arith.index_cast %c6_i32 : i32 to index
    %c0_73 = arith.constant 0 : index
    %c0_74 = arith.constant 0 : index
    %278 = vector.load %arg7[%277, %c0_73, %c0_74] : memref<8x8x128xf32, #tpu.memory_space<vmem>>, vector<1x8x128xf32>
    %279 = vector.shape_cast %278 : vector<1x8x128xf32> to vector<8x128xf32>
    %280 = vector.shape_cast %276 : vector<8x128xf32> to vector<1x8x128xf32>
    tpu.vector_store %arg7[%277, %c0_73, %c0_74], %280 {strides = array<i32>} : memref<8x8x128xf32, #tpu.memory_space<vmem>>, vector<1x8x128xf32>,
    %c7_i32 = arith.constant 7 : i32
    %281 = arith.index_cast %c7_i32 : i32 to index
    %c0_75 = arith.constant 0 : index
    %c0_76 = arith.constant 0 : index
    %282 = vector.load %arg9[%281, %c0_75, %c0_76] : memref<8x8x384xf32, #tpu.memory_space<vmem>>, vector<1x8x384xf32>
    %283 = vector.shape_cast %282 : vector<1x8x384xf32> to vector<8x384xf32>
    %284 = arith.truncf %276 : vector<8x128xf32> to vector<8x128xbf16>
    %cst_77 = arith.constant dense<0.000000e+00> : vector<8x384xf32>
    %285 = tpu.matmul %284, %19, %cst_77 {dimension_numbers = #tpu.dot_dimension_numbers<[1], [0], [0], [1], [0, 0, 1, 1], [], []>} : vector<8x128xbf16>, vector<128x384xbf16>, vector<8x384xf32> -> vector<8x384xf32>
    %286 = vector.extract_strided_slice %283 {offsets = [0, 0], sizes = [8, 128], strides = [1, 1]} : vector<8x384xf32> to vector<8x128xf32>
    %287 = vector.extract_strided_slice %285 {offsets = [0, 0], sizes = [8, 128], strides = [1, 1]} : vector<8x384xf32> to vector<8x128xf32>
    %288 = arith.addf %286, %287 : vector<8x128xf32>
    %289 = arith.negf %288 : vector<8x128xf32>
    %290 = math.exp %289 : vector<8x128xf32>
    %cst_78 = arith.constant 1.000000e+00 : f32
    %291 = vector.broadcast %cst_78 : f32 to vector<8x128xf32>
    %292 = arith.addf %291, %290 : vector<8x128xf32>
    %293 = arith.divf %291, %292 : vector<8x128xf32>
    %294 = vector.extract_strided_slice %283 {offsets = [0, 128], sizes = [8, 128], strides = [1, 1]} : vector<8x384xf32> to vector<8x128xf32>
    %295 = vector.extract_strided_slice %285 {offsets = [0, 128], sizes = [8, 128], strides = [1, 1]} : vector<8x384xf32> to vector<8x128xf32>
    %296 = arith.addf %294, %295 : vector<8x128xf32>
    %297 = arith.negf %296 : vector<8x128xf32>
    %298 = math.exp %297 : vector<8x128xf32>
    %cst_79 = arith.constant 1.000000e+00 : f32
    %299 = vector.broadcast %cst_79 : f32 to vector<8x128xf32>
    %300 = arith.addf %299, %298 : vector<8x128xf32>
    %301 = arith.divf %299, %300 : vector<8x128xf32>
    %302 = vector.extract_strided_slice %283 {offsets = [0, 256], sizes = [8, 128], strides = [1, 1]} : vector<8x384xf32> to vector<8x128xf32>
    %303 = vector.extract_strided_slice %285 {offsets = [0, 256], sizes = [8, 128], strides = [1, 1]} : vector<8x384xf32> to vector<8x128xf32>
    %304 = vector.broadcast %20 : vector<1x128xf32> to vector<8x128xf32>
    %305 = arith.addf %303, %304 : vector<8x128xf32>
    %306 = arith.mulf %293, %305 : vector<8x128xf32>
    %307 = arith.addf %302, %306 : vector<8x128xf32>
    %308 = math.tanh %307 : vector<8x128xf32>
    %cst_80 = arith.constant 1.000000e+00 : f32
    %309 = vector.broadcast %cst_80 : f32 to vector<8x128xf32>
    %310 = arith.subf %309, %301 : vector<8x128xf32>
    %311 = arith.mulf %310, %308 : vector<8x128xf32>
    %312 = arith.mulf %301, %276 : vector<8x128xf32>
    %313 = arith.addf %311, %312 : vector<8x128xf32>
    %314 = arith.index_cast %c7_i32 : i32 to index
    %c0_81 = arith.constant 0 : index
    %c0_82 = arith.constant 0 : index
    %315 = vector.load %arg7[%314, %c0_81, %c0_82] : memref<8x8x128xf32, #tpu.memory_space<vmem>>, vector<1x8x128xf32>
    %316 = vector.shape_cast %315 : vector<1x8x128xf32> to vector<8x128xf32>
    %317 = vector.shape_cast %313 : vector<8x128xf32> to vector<1x8x128xf32>
    tpu.vector_store %arg7[%314, %c0_81, %c0_82], %317 {strides = array<i32>} : memref<8x8x128xf32, #tpu.memory_space<vmem>>, vector<1x8x128xf32>,
    %c8_i32 = arith.constant 8 : i32
    %c0_83 = arith.constant 0 : index
    %c0_84 = arith.constant 0 : index
    %318 = vector.load %arg8[%c0_83, %c0_84] : memref<8x128xf32, #tpu.memory_space<vmem>>, vector<8x128xf32>
    tpu.vector_store %arg8[%c0_83, %c0_84], %313 {strides = array<i32>} : memref<8x128xf32, #tpu.memory_space<vmem>>, vector<8x128xf32>,
    return
  }
  func.func @transform_0(%arg0: i32) -> (i32, i32, i32) {
    %c0_i32 = arith.constant 0 : i32
    %c0_i32_0 = arith.constant 0 : i32
    %c0_i32_1 = arith.constant 0 : i32
    return %arg0, %c0_i32, %c0_i32_0 : i32, i32, i32
  }
  func.func @transform_1(%arg0: i32) -> (i32, i32) {
    %c0_i32 = arith.constant 0 : i32
    %c0_i32_0 = arith.constant 0 : i32
    %c0_i32_1 = arith.constant 0 : i32
    return %c0_i32, %c0_i32_0 : i32, i32
  }
  func.func @transform_2(%arg0: i32) -> (i32, i32) {
    %c0_i32 = arith.constant 0 : i32
    %c0_i32_0 = arith.constant 0 : i32
    %c0_i32_1 = arith.constant 0 : i32
    return %c0_i32, %c0_i32_0 : i32, i32
  }
  func.func @transform_3(%arg0: i32) -> (i32, i32) {
    %c0_i32 = arith.constant 0 : i32
    %c0_i32_0 = arith.constant 0 : i32
    %c0_i32_1 = arith.constant 0 : i32
    return %c0_i32, %c0_i32_0 : i32, i32
  }
  func.func @transform_4(%arg0: i32) -> (i32, i32) {
    %c0_i32 = arith.constant 0 : i32
    %c0_i32_0 = arith.constant 0 : i32
    %c0_i32_1 = arith.constant 0 : i32
    return %c0_i32, %c0_i32_0 : i32, i32
  }
  func.func @transform_5(%arg0: i32) -> (i32, i32) {
    %c0_i32 = arith.constant 0 : i32
    %c0_i32_0 = arith.constant 0 : i32
    %c0_i32_1 = arith.constant 0 : i32
    return %c0_i32, %c0_i32_0 : i32, i32
  }
  func.func @transform_6(%arg0: i32) -> (i32, i32, i32) {
    %c0_i32 = arith.constant 0 : i32
    %c0_i32_0 = arith.constant 0 : i32
    %c0_i32_1 = arith.constant 0 : i32
    return %c0_i32, %arg0, %c0_i32_0 : i32, i32, i32
  }
  func.func @transform_7(%arg0: i32) -> (i32, i32) {
    %c0_i32 = arith.constant 0 : i32
    %c0_i32_0 = arith.constant 0 : i32
    return %arg0, %c0_i32 : i32, i32
  }
}

</mosaic_0001>

<llo_original>
// kernel: tpu_custom_call.1
$region0: #{tpu_custom_call.1}
  #allocation0 [shape = 'u32[]', space=smem, size = 0x4, offset = 0x4, fixed_abs, tag = 'smem constant byte address 0x4 - core index']
  #allocation1 [shape = 'u32[72,128]{1,0:T(1,128)}', space=vmem, size = 0x9000, scoped, tag = 'internal scratch']
  #allocation2 [shape = 'f32[8,8,384]{2,1,0:T(8,128)}', space=vmem, size = 0x18000, scoped, tag = 'scratch operand']
  %s0 = inlined_call_operand.vmem [shape: s32[1,64,1], index: 0, kind: input, shape index: {}]
  %s1 = inlined_call_operand.vmem [shape: bf16[128,128], index: 1, kind: input, shape index: {}]
  %s2 = inlined_call_operand.hbm [shape: bf16[128,384], index: 2, kind: input, shape index: {}]
  %s3 = inlined_call_operand.hbm [shape: bf16[128,384], index: 3, kind: input, shape index: {}]
  %s4 = inlined_call_operand.vmem [shape: f32[1,384], index: 4, kind: input, shape index: {}]
  %s5 = inlined_call_operand.vmem [shape: f32[1,128], index: 5, kind: input, shape index: {}]
  %s6 = inlined_call_operand.hbm [shape: f32[8,8,128], index: 6, kind: output, shape index: {0}]
  %s7 = inlined_call_operand.hbm [shape: f32[8,128], index: 7, kind: output, shape index: {1}]
  %8 = xla_tuple %s6, %s7
  %s9 = sld [smem:[#allocation0]]
  $region50: #{tpu_custom_call.1} parent=0
    _
  %s11 = ssub.s32 1, %s9
  %s12 = scalar_select 0, %s11, %s9
  $region1: #{tpu_custom_call.1} parent=0
    #allocation3 [shape = 'u8[98304]{0}', space=vmem, size = 0x18000, scoped, tag = 'input window, operand 2, single buffered']
    #allocation4 [shape = 's32[1]{0}', space=sflag, size = 0x4, scoped, tag = 'scoped memory for tpu_custom_call.1']
    #allocation5 [shape = 's32[1]{0}', space=sflag, size = 0x4, scoped, tag = 'scoped memory for tpu_custom_call.1']
    #allocation6 [shape = 'u8[98304]{0}', space=vmem, size = 0x18000, scoped, tag = 'input window, operand 3, single buffered']
    #allocation7 [shape = 's32[1]{0}', space=sflag, size = 0x4, scoped, tag = 'scoped memory for tpu_custom_call.1']
    #allocation8 [shape = 'u8[32768]{0}', space=vmem, size = 0x8000, scoped, tag = 'output window, operand 0, single buffered']
    #allocation9 [shape = 'u8[4096]{0}', space=vmem, size = 0x1000, scoped, tag = 'output window, operand 1, single buffered']
    #allocation10 [shape = 's32[1]{0}', space=sflag, size = 0x4, scoped, tag = 'scoped memory for tpu_custom_call.1']
    %13 = vsyncpa [#allocation4], 0
    %14 = vsyncpa [#allocation7], 0
    %15 = vsyncpa [#allocation5], 0
    %16 = vsyncpa [#allocation10], 0
    // Predicated region
    $region2: #{tpu_custom_call.1} parent=1 // pred_check
      _
    $region3: #{tpu_custom_call.1} parent=1 // pred_check_branch
      %18 = sbr.rel (0) target = $region5
    $region4: #{tpu_custom_call.1} parent=1 // pred_region
      _
    $region5: #{tpu_custom_call.1} parent=1 // pred_fallthru
      _
    // Predicated region
    $region6: #{tpu_custom_call.1} parent=1 // pred_check
      _
    $region7: #{tpu_custom_call.1} parent=1 // pred_check_branch
      %20 = sbr.rel (0) target = $region9
    $region8: #{tpu_custom_call.1} parent=1 // pred_region
      _
    $region9: #{tpu_custom_call.1} parent=1 // pred_fallthru
      _
    // Predicated region
    $region10: #{tpu_custom_call.1} parent=1 // pred_check
      _
    $region11: #{tpu_custom_call.1} parent=1 // pred_check_branch
      %22 = sbr.rel (0) target = $region13
    $region12: #{tpu_custom_call.1} parent=1 // pred_region
      %24 = vsyncadd [#allocation4], 0
      %s25 = sshll.u32 %s2, 4
      %s26 = int_to_ptr.hbm [resolvable:$true] %s25
      %s27 = sshll.u32 [#allocation3], 4
      %s28 = int_to_ptr.vmem [resolvable:$true] %s27
      %33 = dma.hbm_to_vmem [thread:$0]  %s26, 3072, %s28, [#allocation4], 192, 192, 12
    $region13: #{tpu_custom_call.1} parent=1 // pred_fallthru
      _
    // Predicated region
    $region14: #{tpu_custom_call.1} parent=1 // pred_check
      _
    $region15: #{tpu_custom_call.1} parent=1 // pred_check_branch
      %35 = sbr.rel (0) target = $region17
    $region16: #{tpu_custom_call.1} parent=1 // pred_region
      %37 = vsyncadd [#allocation7], 0
      %s38 = sshll.u32 %s3, 4
      %s39 = int_to_ptr.hbm [resolvable:$true] %s38
      %s40 = sshll.u32 [#allocation6], 4
      %s41 = int_to_ptr.vmem [resolvable:$true] %s40
      %46 = dma.hbm_to_vmem [thread:$0]  %s39, 3072, %s41, [#allocation7], 192, 192, 12
    $region17: #{tpu_custom_call.1} parent=1 // pred_fallthru
      _
    // Predicated region
    $region18: #{tpu_custom_call.1} parent=1 // pred_check
      _
    $region19: #{tpu_custom_call.1} parent=1 // pred_check_branch
      %48 = sbr.rel (0) target = $region21
    $region20: #{tpu_custom_call.1} parent=1 // pred_region
      _
    $region21: #{tpu_custom_call.1} parent=1 // pred_fallthru
      _
    // Predicated region
    $region22: #{tpu_custom_call.1} parent=1 // pred_check
      _
    $region23: #{tpu_custom_call.1} parent=1 // pred_check_branch
      %50 = sbr.rel (0) target = $region25
    $region24: #{tpu_custom_call.1} parent=1 // pred_region
      _
    $region25: #{tpu_custom_call.1} parent=1 // pred_fallthru
      _
    // Predicated region
    $region26: #{tpu_custom_call.1} parent=1 // pred_check
      _
    $region27: #{tpu_custom_call.1} parent=1 // pred_check_branch
      %52 = sbr.rel (0) target = $region29
    $region28: #{tpu_custom_call.1} parent=1 // pred_region
      %54 = dma.done [#allocation4], 3072
    $region29: #{tpu_custom_call.1} parent=1 // pred_fallthru
      _
    // Predicated region
    $region30: #{tpu_custom_call.1} parent=1 // pred_check
      _
    $region31: #{tpu_custom_call.1} parent=1 // pred_check_branch
      %56 = sbr.rel (0) target = $region33
    $region32: #{tpu_custom_call.1} parent=1 // pred_region
      %58 = dma.done [#allocation7], 3072
    $region33: #{tpu_custom_call.1} parent=1 // pred_fallthru
      _
    %v60 = vld [vmem:[%s0] sm:$0xff]
    %v61 = vld [vmem:[%s0 + $0x8] sm:$0xff]
    %v62 = vld [vmem:[%s0 + $0x10] sm:$0xff]
    %v63 = vld [vmem:[%s0 + $0x18] sm:$0xff]
    %v64 = vld [vmem:[%s0 + $0x20] sm:$0xff]
    %v65 = vld [vmem:[%s0 + $0x28] sm:$0xff]
    %v66 = vld [vmem:[%s0 + $0x30] sm:$0xff]
    %v67 = vld [vmem:[%s0 + $0x38] sm:$0xff]
    %v68 = vlaneseq
    %v69 = vand.u32 %v68, 127
    %70 = vset.pattern.permute.xlu0 0
    %71 = vperm.xlu0 %70, %v60
    %v72 = vpop.permute.xlu0 %71
    %73 = vset.pattern.permute.xlu0 0
    %74 = vperm.xlu0 %73, %v61
    %v75 = vpop.permute.xlu0 %74
    %76 = vset.pattern.permute.xlu0 0
    %77 = vperm.xlu0 %76, %v62
    %v78 = vpop.permute.xlu0 %77
    %79 = vset.pattern.permute.xlu0 0
    %80 = vperm.xlu0 %79, %v63
    %v81 = vpop.permute.xlu0 %80
    %82 = vset.pattern.permute.xlu0 0
    %83 = vperm.xlu0 %82, %v64
    %v84 = vpop.permute.xlu0 %83
    %85 = vset.pattern.permute.xlu0 0
    %86 = vperm.xlu0 %85, %v65
    %v87 = vpop.permute.xlu0 %86
    %88 = vset.pattern.permute.xlu0 0
    %89 = vperm.xlu0 %88, %v66
    %v90 = vpop.permute.xlu0 %89
    %91 = vset.pattern.permute.xlu0 0
    %92 = vperm.xlu0 %91, %v67
    %v93 = vpop.permute.xlu0 %92
    %vm94 = vcmp.eq.s32.totalorder %v72, %v69
    %vm95 = vcmp.eq.s32.totalorder %v75, %v69
    %vm96 = vcmp.eq.s32.totalorder %v78, %v69
    %vm97 = vcmp.eq.s32.totalorder %v81, %v69
    %vm98 = vcmp.eq.s32.totalorder %v84, %v69
    %vm99 = vcmp.eq.s32.totalorder %v87, %v69
    %vm100 = vcmp.eq.s32.totalorder %v90, %v69
    %vm101 = vcmp.eq.s32.totalorder %v93, %v69
    %v102 = vsel %vm94, 1.0, 0.0
    %v103 = vsel %vm95, 1.0, 0.0
    %v104 = vsel %vm96, 1.0, 0.0
    %v105 = vsel %vm97, 1.0, 0.0
    %v106 = vsel %vm98, 1.0, 0.0
    %v107 = vsel %vm99, 1.0, 0.0
    %v108 = vsel %vm100, 1.0, 0.0
    %v109 = vsel %vm101, 1.0, 0.0
    %v110 = vpack.c.bf16 %v103, %v102
    %v111 = vpack.c.bf16 %v105, %v104
    %v112 = vpack.c.bf16 %v107, %v106
    %v113 = vpack.c.bf16 %v109, %v108
    %v114 = vld [vmem:[%s1] sm:$0xf]
    %v115 = vld [vmem:[%s1 + $0x4] sm:$0xf]
    %v116 = vld [vmem:[%s1 + $0x8] sm:$0xf]
    %v117 = vld [vmem:[%s1 + $0xc] sm:$0xf]
    %v118 = vld [vmem:[%s1 + $0x10] sm:$0xf]
    %v119 = vld [vmem:[%s1 + $0x14] sm:$0xf]
    %v120 = vld [vmem:[%s1 + $0x18] sm:$0xf]
    %v121 = vld [vmem:[%s1 + $0x1c] sm:$0xf]
    %v122 = vld [vmem:[%s1 + $0x20] sm:$0xf]
    %v123 = vld [vmem:[%s1 + $0x24] sm:$0xf]
    %v124 = vld [vmem:[%s1 + $0x28] sm:$0xf]
    %v125 = vld [vmem:[%s1 + $0x2c] sm:$0xf]
    %v126 = vld [vmem:[%s1 + $0x30] sm:$0xf]
    %v127 = vld [vmem:[%s1 + $0x34] sm:$0xf]
    %v128 = vld [vmem:[%s1 + $0x38] sm:$0xf]
    %v129 = vld [vmem:[%s1 + $0x3c] sm:$0xf]
    %v146 = vunpack.c.l.b16 %v114
    %v147 = vunpack.c.l.b16 %v115
    %v148 = vunpack.c.l.b16 %v116
    %v149 = vunpack.c.l.b16 %v117
    %v150 = vunpack.c.l.b16 %v118
    %v151 = vunpack.c.l.b16 %v119
    %v152 = vunpack.c.l.b16 %v120
    %v153 = vunpack.c.l.b16 %v121
    %v154 = vunpack.c.l.b16 %v122
    %v155 = vunpack.c.l.b16 %v123
    %v156 = vunpack.c.l.b16 %v124
    %v157 = vunpack.c.l.b16 %v125
    %v158 = vunpack.c.l.b16 %v126
    %v159 = vunpack.c.l.b16 %v127
    %v160 = vunpack.c.l.b16 %v128
    %v161 = vunpack.c.l.b16 %v129
    %v162 = vpack.c.b16 %v147, %v146
    %v163 = vpack.c.b16 %v149, %v148
    %v164 = vpack.c.b16 %v151, %v150
    %v165 = vpack.c.b16 %v153, %v152
    %v166 = vpack.c.b16 %v155, %v154
    %v167 = vpack.c.b16 %v157, %v156
    %v168 = vpack.c.b16 %v159, %v158
    %v169 = vpack.c.b16 %v161, %v160
    %178 = vmatpush.bf16.msra.mxu0 %v169
    %179 = vmatpush.bf16.msra.mxu0 %v168
    %180 = vmatpush.bf16.msra.mxu0 %v167
    %181 = vmatpush.bf16.msra.mxu0 %v166
    %182 = vmatpush.bf16.msra.mxu0 %v165
    %183 = vmatpush.bf16.msra.mxu0 %v164
    %184 = vmatpush.bf16.msra.mxu0 %v163
    %185 = vmatpush.bf16.msra.mxu0 %v162
    %186 = vmatmul.bf16.gmra.mxu0 %v110
    %v187 = vpop.f32.mrf.mxu0
    %v188 = vadd.f32 0.0, %v187
    %v189 = vpop.f32.mrf.mxu0
    %v190 = vadd.f32 0.0, %v189
    %191 = vmatmul.bf16.gmra.mxu0 %v111
    %v192 = vpop.f32.mrf.mxu0
    %v193 = vadd.f32 0.0, %v192
    %v194 = vpop.f32.mrf.mxu0
    %v195 = vadd.f32 0.0, %v194
    %196 = vmatmul.bf16.gmra.mxu0 %v112
    %v197 = vpop.f32.mrf.mxu0
    %v198 = vadd.f32 0.0, %v197
    %v199 = vpop.f32.mrf.mxu0
    %v200 = vadd.f32 0.0, %v199
    %201 = vmatmul.bf16.gmra.mxu0 %v113
    %v202 = vpop.f32.mrf.mxu0
    %v203 = vadd.f32 0.0, %v202
    %v204 = vpop.f32.mrf.mxu0
    %v205 = vadd.f32 0.0, %v204
    %206 = vdwg.mxu0
    %v207 = vpack.c.bf16 %v190, %v188
    %v208 = vpack.c.bf16 %v195, %v193
    %v209 = vpack.c.bf16 %v200, %v198
    %v210 = vpack.c.bf16 %v205, %v203
    %v211 = vld [vmem:[#allocation3] sm:$0xff]
    %v212 = vld [vmem:[#allocation3 + $0x8] sm:$0xf]
    %v213 = vld [vmem:[#allocation3 + $0xc] sm:$0xff]
    %v214 = vld [vmem:[#allocation3 + $0x14] sm:$0xf]
    %v215 = vld [vmem:[#allocation3 + $0x18] sm:$0xff]
    %v216 = vld [vmem:[#allocation3 + $0x20] sm:$0xf]
    %v217 = vld [vmem:[#allocation3 + $0x24] sm:$0xff]
    %v218 = vld [vmem:[#allocation3 + $0x2c] sm:$0xf]
    %v219 = vld [vmem:[#allocation3 + $0x30] sm:$0xff]
    %v220 = vld [vmem:[#allocation3 + $0x38] sm:$0xf]
    %v221 = vld [vmem:[#allocation3 + $0x3c] sm:$0xff]
    %v222 = vld [vmem:[#allocation3 + $0x44] sm:$0xf]
    %v223 = vld [vmem:[#allocation3 + $0x48] sm:$0xff]
    %v224 = vld [vmem:[#allocation3 + $0x50] sm:$0xf]
    %v225 = vld [vmem:[#allocation3 + $0x54] sm:$0xff]
    %v226 = vld [vmem:[#allocation3 + $0x5c] sm:$0xf]
    %v227 = vld [vmem:[#allocation3 + $0x60] sm:$0xff]
    %v228 = vld [vmem:[#allocation3 + $0x68] sm:$0xf]
    %v229 = vld [vmem:[#allocation3 + $0x6c] sm:$0xff]
    %v230 = vld [vmem:[#allocation3 + $0x74] sm:$0xf]
    %v231 = vld [vmem:[#allocation3 + $0x78] sm:$0xff]
    %v232 = vld [vmem:[#allocation3 + $0x80] sm:$0xf]
    %v233 = vld [vmem:[#allocation3 + $0x84] sm:$0xff]
    %v234 = vld [vmem:[#allocation3 + $0x8c] sm:$0xf]
    %v235 = vld [vmem:[#allocation3 + $0x90] sm:$0xff]
    %v236 = vld [vmem:[#allocation3 + $0x98] sm:$0xf]
    %v237 = vld [vmem:[#allocation3 + $0x9c] sm:$0xff]
    %v238 = vld [vmem:[#allocation3 + $0xa4] sm:$0xf]
    %v239 = vld [vmem:[#allocation3 + $0xa8] sm:$0xff]
    %v240 = vld [vmem:[#allocation3 + $0xb0] sm:$0xf]
    %v241 = vld [vmem:[#allocation3 + $0xb4] sm:$0xff]
    %v242 = vld [vmem:[#allocation3 + $0xbc] sm:$0xf]
    %v243 = vld [vmem:[%s4] sm:$0x7]
    %v245 = vperm.slane %v243, 0
    %v246 = vperm.slane %v243, 1
    %v247 = vperm.slane %v243, 2
    %v283 = vunpack.c.l.b16 %v211
    %v284 = vunpack.c.h.b16 %v211
    %v285 = vunpack.c.l.b16 %v212
    %v286 = vunpack.c.l.b16 %v213
    %v287 = vunpack.c.h.b16 %v213
    %v288 = vunpack.c.l.b16 %v214
    %v289 = vunpack.c.l.b16 %v215
    %v290 = vunpack.c.h.b16 %v215
    %v291 = vunpack.c.l.b16 %v216
    %v292 = vunpack.c.l.b16 %v217
    %v293 = vunpack.c.h.b16 %v217
    %v294 = vunpack.c.l.b16 %v218
    %v295 = vunpack.c.l.b16 %v219
    %v296 = vunpack.c.h.b16 %v219
    %v297 = vunpack.c.l.b16 %v220
    %v298 = vunpack.c.l.b16 %v221
    %v299 = vunpack.c.h.b16 %v221
    %v300 = vunpack.c.l.b16 %v222
    %v301 = vunpack.c.l.b16 %v223
    %v302 = vunpack.c.h.b16 %v223
    %v303 = vunpack.c.l.b16 %v224
    %v304 = vunpack.c.l.b16 %v225
    %v305 = vunpack.c.h.b16 %v225
    %v306 = vunpack.c.l.b16 %v226
    %v307 = vunpack.c.l.b16 %v227
    %v308 = vunpack.c.h.b16 %v227
    %v309 = vunpack.c.l.b16 %v228
    %v310 = vunpack.c.l.b16 %v229
    %v311 = vunpack.c.h.b16 %v229
    %v312 = vunpack.c.l.b16 %v230
    %v313 = vunpack.c.l.b16 %v231
    %v314 = vunpack.c.h.b16 %v231
    %v315 = vunpack.c.l.b16 %v232
    %v316 = vunpack.c.l.b16 %v233
    %v317 = vunpack.c.h.b16 %v233
    %v318 = vunpack.c.l.b16 %v234
    %v319 = vunpack.c.l.b16 %v235
    %v320 = vunpack.c.h.b16 %v235
    %v321 = vunpack.c.l.b16 %v236
    %v322 = vunpack.c.l.b16 %v237
    %v323 = vunpack.c.h.b16 %v237
    %v324 = vunpack.c.l.b16 %v238
    %v325 = vunpack.c.l.b16 %v239
    %v326 = vunpack.c.h.b16 %v239
    %v327 = vunpack.c.l.b16 %v240
    %v328 = vunpack.c.l.b16 %v241
    %v329 = vunpack.c.h.b16 %v241
    %v330 = vunpack.c.l.b16 %v242
    %v331 = vpack.c.b16 %v286, %v283
    %v332 = vpack.c.b16 %v287, %v284
    %v333 = vpack.c.b16 %v288, %v285
    %v334 = vpack.c.b16 %v292, %v289
    %v335 = vpack.c.b16 %v293, %v290
    %v336 = vpack.c.b16 %v294, %v291
    %v337 = vpack.c.b16 %v298, %v295
    %v338 = vpack.c.b16 %v299, %v296
    %v339 = vpack.c.b16 %v300, %v297
    %v340 = vpack.c.b16 %v304, %v301
    %v341 = vpack.c.b16 %v305, %v302
    %v342 = vpack.c.b16 %v306, %v303
    %v343 = vpack.c.b16 %v310, %v307
    %v344 = vpack.c.b16 %v311, %v308
    %v345 = vpack.c.b16 %v312, %v309
    %v346 = vpack.c.b16 %v316, %v313
    %v347 = vpack.c.b16 %v317, %v314
    %v348 = vpack.c.b16 %v318, %v315
    %v349 = vpack.c.b16 %v322, %v319
    %v350 = vpack.c.b16 %v323, %v320
    %v351 = vpack.c.b16 %v324, %v321
    %v352 = vpack.c.b16 %v328, %v325
    %v353 = vpack.c.b16 %v329, %v326
    %v354 = vpack.c.b16 %v330, %v327
    %379 = vmatpush.bf16.msra.mxu0 %v352
    %380 = vmatpush.bf16.msra.mxu0 %v349
    %381 = vmatpush.bf16.msra.mxu0 %v346
    %382 = vmatpush.bf16.msra.mxu0 %v343
    %383 = vmatpush.bf16.msra.mxu0 %v340
    %384 = vmatpush.bf16.msra.mxu0 %v337
    %385 = vmatpush.bf16.msra.mxu0 %v334
    %386 = vmatpush.bf16.msra.mxu0 %v331
    %387 = vmatmul.bf16.gmra.mxu0 %v207
    %v388 = vpop.f32.mrf.mxu0
    %v389 = vadd.f32 %v245, %v388
    %v390 = vpop.f32.mrf.mxu0
    %v391 = vadd.f32 %v245, %v390
    %392 = vmatmul.bf16.gmra.mxu0 %v208
    %v393 = vpop.f32.mrf.mxu0
    %v394 = vadd.f32 %v245, %v393
    %v395 = vpop.f32.mrf.mxu0
    %v396 = vadd.f32 %v245, %v395
    %397 = vmatmul.bf16.gmra.mxu0 %v209
    %v398 = vpop.f32.mrf.mxu0
    %v399 = vadd.f32 %v245, %v398
    %v400 = vpop.f32.mrf.mxu0
    %v401 = vadd.f32 %v245, %v400
    %402 = vmatmul.bf16.gmra.mxu0 %v210
    %v403 = vpop.f32.mrf.mxu0
    %v404 = vadd.f32 %v245, %v403
    %v405 = vpop.f32.mrf.mxu0
    %v406 = vadd.f32 %v245, %v405
    %407 = vdwg.mxu0
    %408 = vmatpush.bf16.msra.mxu0 %v353
    %409 = vmatpush.bf16.msra.mxu0 %v350
    %410 = vmatpush.bf16.msra.mxu0 %v347
    %411 = vmatpush.bf16.msra.mxu0 %v344
    %412 = vmatpush.bf16.msra.mxu0 %v341
    %413 = vmatpush.bf16.msra.mxu0 %v338
    %414 = vmatpush.bf16.msra.mxu0 %v335
    %415 = vmatpush.bf16.msra.mxu0 %v332
    %416 = vmatmul.bf16.gmra.mxu0 %v207
    %v417 = vpop.f32.mrf.mxu0
    %v418 = vadd.f32 %v246, %v417
    %v419 = vpop.f32.mrf.mxu0
    %v420 = vadd.f32 %v246, %v419
    %421 = vmatmul.bf16.gmra.mxu0 %v208
    %v422 = vpop.f32.mrf.mxu0
    %v423 = vadd.f32 %v246, %v422
    %v424 = vpop.f32.mrf.mxu0
    %v425 = vadd.f32 %v246, %v424
    %426 = vmatmul.bf16.gmra.mxu0 %v209
    %v427 = vpop.f32.mrf.mxu0
    %v428 = vadd.f32 %v246, %v427
    %v429 = vpop.f32.mrf.mxu0
    %v430 = vadd.f32 %v246, %v429
    %431 = vmatmul.bf16.gmra.mxu0 %v210
    %v432 = vpop.f32.mrf.mxu0
    %v433 = vadd.f32 %v246, %v432
    %v434 = vpop.f32.mrf.mxu0
    %v435 = vadd.f32 %v246, %v434
    %436 = vdwg.mxu0
    %437 = vmatpush.bf16.msra.mxu0 %v354
    %438 = vmatpush.bf16.msra.mxu0 %v351
    %439 = vmatpush.bf16.msra.mxu0 %v348
    %440 = vmatpush.bf16.msra.mxu0 %v345
    %441 = vmatpush.bf16.msra.mxu0 %v342
    %442 = vmatpush.bf16.msra.mxu0 %v339
    %443 = vmatpush.bf16.msra.mxu0 %v336
    %444 = vmatpush.bf16.msra.mxu0 %v333
    %445 = vmatmul.bf16.gmra.mxu0 %v207
    %v446 = vpop.f32.mrf.mxu0
    %v447 = vadd.f32 %v247, %v446
    %v448 = vpop.f32.mrf.mxu0
    %v449 = vadd.f32 %v247, %v448
    %450 = vmatmul.bf16.gmra.mxu0 %v208
    %v451 = vpop.f32.mrf.mxu0
    %v452 = vadd.f32 %v247, %v451
    %v453 = vpop.f32.mrf.mxu0
    %v454 = vadd.f32 %v247, %v453
    %455 = vmatmul.bf16.gmra.mxu0 %v209
    %v456 = vpop.f32.mrf.mxu0
    %v457 = vadd.f32 %v247, %v456
    %v458 = vpop.f32.mrf.mxu0
    %v459 = vadd.f32 %v247, %v458
    %460 = vmatmul.bf16.gmra.mxu0 %v210
    %v461 = vpop.f32.mrf.mxu0
    %v462 = vadd.f32 %v247, %v461
    %v463 = vpop.f32.mrf.mxu0
    %v464 = vadd.f32 %v247, %v463
    %465 = vdwg.mxu0
    %466 = vst [vmem:[#allocation2] sm:$0xff] %v389
    %467 = vst [vmem:[#allocation2 + $0x8] sm:$0xff] %v418
    %468 = vst [vmem:[#allocation2 + $0x10] sm:$0xff] %v447
    %469 = vst [vmem:[#allocation2 + $0x18] sm:$0xff] %v391
    %470 = vst [vmem:[#allocation2 + $0x20] sm:$0xff] %v420
    %471 = vst [vmem:[#allocation2 + $0x28] sm:$0xff] %v449
    %472 = vst [vmem:[#allocation2 + $0x30] sm:$0xff] %v394
    %473 = vst [vmem:[#allocation2 + $0x38] sm:$0xff] %v423
    %474 = vst [vmem:[#allocation2 + $0x40] sm:$0xff] %v452
    %475 = vst [vmem:[#allocation2 + $0x48] sm:$0xff] %v396
    %476 = vst [vmem:[#allocation2 + $0x50] sm:$0xff] %v425
    %477 = vst [vmem:[#allocation2 + $0x58] sm:$0xff] %v454
    %478 = vst [vmem:[#allocation2 + $0x60] sm:$0xff] %v399
    %479 = vst [vmem:[#allocation2 + $0x68] sm:$0xff] %v428
    %480 = vst [vmem:[#allocation2 + $0x70] sm:$0xff] %v457
    %481 = vst [vmem:[#allocation2 + $0x78] sm:$0xff] %v401
    %482 = vst [vmem:[#allocation2 + $0x80] sm:$0xff] %v430
    %483 = vst [vmem:[#allocation2 + $0x88] sm:$0xff] %v459
    %484 = vst [vmem:[#allocation2 + $0x90] sm:$0xff] %v404
    %485 = vst [vmem:[#allocation2 + $0x98] sm:$0xff] %v433
    %486 = vst [vmem:[#allocation2 + $0xa0] sm:$0xff] %v462
    %487 = vst [vmem:[#allocation2 + $0xa8] sm:$0xff] %v406
    %488 = vst [vmem:[#allocation2 + $0xb0] sm:$0xff] %v435
    %489 = vst [vmem:[#allocation2 + $0xb8] sm:$0xff] %v464
    %v490 = vld [vmem:[#allocation6] sm:$0xff]
    %v491 = vld [vmem:[#allocation6 + $0x8] sm:$0xf]
    %v492 = vld [vmem:[#allocation6 + $0xc] sm:$0xff]
    %v493 = vld [vmem:[#allocation6 + $0x14] sm:$0xf]
    %v494 = vld [vmem:[#allocation6 + $0x18] sm:$0xff]
    %v495 = vld [vmem:[#allocation6 + $0x20] sm:$0xf]
    %v496 = vld [vmem:[#allocation6 + $0x24] sm:$0xff]
    %v497 = vld [vmem:[#allocation6 + $0x2c] sm:$0xf]
    %v498 = vld [vmem:[#allocation6 + $0x30] sm:$0xff]
    %v499 = vld [vmem:[#allocation6 + $0x38] sm:$0xf]
    %v500 = vld [vmem:[#allocation6 + $0x3c] sm:$0xff]
    %v501 = vld [vmem:[#allocation6 + $0x44] sm:$0xf]
    %v502 = vld [vmem:[#allocation6 + $0x48] sm:$0xff]
    %v503 = vld [vmem:[#allocation6 + $0x50] sm:$0xf]
    %v504 = vld [vmem:[#allocation6 + $0x54] sm:$0xff]
    %v505 = vld [vmem:[#allocation6 + $0x5c] sm:$0xf]
    %v506 = vld [vmem:[#allocation6 + $0x60] sm:$0xff]
    %v507 = vld [vmem:[#allocation6 + $0x68] sm:$0xf]
    %v508 = vld [vmem:[#allocation6 + $0x6c] sm:$0xff]
    %v509 = vld [vmem:[#allocation6 + $0x74] sm:$0xf]
    %v510 = vld [vmem:[#allocation6 + $0x78] sm:$0xff]
    %v511 = vld [vmem:[#allocation6 + $0x80] sm:$0xf]
    %v512 = vld [vmem:[#allocation6 + $0x84] sm:$0xff]
    %v513 = vld [vmem:[#allocation6 + $0x8c] sm:$0xf]
    %v514 = vld [vmem:[#allocation6 + $0x90] sm:$0xff]
    %v515 = vld [vmem:[#allocation6 + $0x98] sm:$0xf]
    %v516 = vld [vmem:[#allocation6 + $0x9c] sm:$0xff]
    %v517 = vld [vmem:[#allocation6 + $0xa4] sm:$0xf]
    %v518 = vld [vmem:[#allocation6 + $0xa8] sm:$0xff]
    %v519 = vld [vmem:[#allocation6 + $0xb0] sm:$0xf]
    %v520 = vld [vmem:[#allocation6 + $0xb4] sm:$0xff]
    %v521 = vld [vmem:[#allocation6 + $0xbc] sm:$0xf]
    %v522 = vld [vmem:[%s5] sm:$0x1]
    %v523 = vld [vmem:[#allocation2] sm:$0xff]
    %v524 = vld [vmem:[#allocation2 + $0x8] sm:$0xff]
    %v525 = vld [vmem:[#allocation2 + $0x10] sm:$0xff]
    %v558 = vunpack.c.l.b16 %v490
    %v559 = vunpack.c.h.b16 %v490
    %v560 = vunpack.c.l.b16 %v491
    %v561 = vunpack.c.l.b16 %v492
    %v562 = vunpack.c.h.b16 %v492
    %v563 = vunpack.c.l.b16 %v493
    %v564 = vunpack.c.l.b16 %v494
    %v565 = vunpack.c.h.b16 %v494
    %v566 = vunpack.c.l.b16 %v495
    %v567 = vunpack.c.l.b16 %v496
    %v568 = vunpack.c.h.b16 %v496
    %v569 = vunpack.c.l.b16 %v497
    %v570 = vunpack.c.l.b16 %v498
    %v571 = vunpack.c.h.b16 %v498
    %v572 = vunpack.c.l.b16 %v499
    %v573 = vunpack.c.l.b16 %v500
    %v574 = vunpack.c.h.b16 %v500
    %v575 = vunpack.c.l.b16 %v501
    %v576 = vunpack.c.l.b16 %v502
    %v577 = vunpack.c.h.b16 %v502
    %v578 = vunpack.c.l.b16 %v503
    %v579 = vunpack.c.l.b16 %v504
    %v580 = vunpack.c.h.b16 %v504
    %v581 = vunpack.c.l.b16 %v505
    %v582 = vunpack.c.l.b16 %v506
    %v583 = vunpack.c.h.b16 %v506
    %v584 = vunpack.c.l.b16 %v507
    %v585 = vunpack.c.l.b16 %v508
    %v586 = vunpack.c.h.b16 %v508
    %v587 = vunpack.c.l.b16 %v509
    %v588 = vunpack.c.l.b16 %v510
    %v589 = vunpack.c.h.b16 %v510
    %v590 = vunpack.c.l.b16 %v511
    %v591 = vunpack.c.l.b16 %v512
    %v592 = vunpack.c.h.b16 %v512
    %v593 = vunpack.c.l.b16 %v513
    %v594 = vunpack.c.l.b16 %v514
    %v595 = vunpack.c.h.b16 %v514
    %v596 = vunpack.c.l.b16 %v515
    %v597 = vunpack.c.l.b16 %v516
    %v598 = vunpack.c.h.b16 %v516
    %v599 = vunpack.c.l.b16 %v517
    %v600 = vunpack.c.l.b16 %v518
    %v601 = vunpack.c.h.b16 %v518
    %v602 = vunpack.c.l.b16 %v519
    %v603 = vunpack.c.l.b16 %v520
    %v604 = vunpack.c.h.b16 %v520
    %v605 = vunpack.c.l.b16 %v521
    %v606 = vpack.c.b16 %v561, %v558
    %v607 = vpack.c.b16 %v562, %v559
    %v608 = vpack.c.b16 %v563, %v560
    %v609 = vpack.c.b16 %v567, %v564
    %v610 = vpack.c.b16 %v568, %v565
    %v611 = vpack.c.b16 %v569, %v566
    %v612 = vpack.c.b16 %v573, %v570
    %v613 = vpack.c.b16 %v574, %v571
    %v614 = vpack.c.b16 %v575, %v572
    %v615 = vpack.c.b16 %v579, %v576
    %v616 = vpack.c.b16 %v580, %v577
    %v617 = vpack.c.b16 %v581, %v578
    %v618 = vpack.c.b16 %v585, %v582
    %v619 = vpack.c.b16 %v586, %v583
    %v620 = vpack.c.b16 %v587, %v584
    %v621 = vpack.c.b16 %v591, %v588
    %v622 = vpack.c.b16 %v592, %v589
    %v623 = vpack.c.b16 %v593, %v590
    %v624 = vpack.c.b16 %v597, %v594
    %v625 = vpack.c.b16 %v598, %v595
    %v626 = vpack.c.b16 %v599, %v596
    %v627 = vpack.c.b16 %v603, %v600
    %v628 = vpack.c.b16 %v604, %v601
    %v629 = vpack.c.b16 %v605, %v602
    %654 = vmatpush.bf16.msra.mxu0 %v627
    %655 = vmatpush.bf16.msra.mxu0 %v624
    %656 = vmatpush.bf16.msra.mxu0 %v621
    %657 = vmatpush.bf16.msra.mxu0 %v618
    %658 = vmatpush.bf16.msra.mxu0 %v615
    %659 = vmatpush.bf16.msra.mxu0 %v612
    %660 = vmatpush.bf16.msra.mxu0 %v609
    %661 = vmatpush.bf16.msra.mxu0 %v606
    %662 = vmatmul.bf16.gmra.mxu0 0
    %v663 = vpop.f32.mrf.mxu0
    %v664 = vadd.f32 0.0, %v663
    %v665 = vpop.f32.mrf.mxu0
    %666 = vdwg.mxu0
    %667 = vmatpush.bf16.msra.mxu0 %v628
    %668 = vmatpush.bf16.msra.mxu0 %v625
    %669 = vmatpush.bf16.msra.mxu0 %v622
    %670 = vmatpush.bf16.msra.mxu0 %v619
    %671 = vmatpush.bf16.msra.mxu0 %v616
    %672 = vmatpush.bf16.msra.mxu0 %v613
    %673 = vmatpush.bf16.msra.mxu0 %v610
    %674 = vmatpush.bf16.msra.mxu0 %v607
    %675 = vmatmul.bf16.gmra.mxu0 0
    %v676 = vpop.f32.mrf.mxu0
    %v677 = vadd.f32 0.0, %v676
    %v678 = vpop.f32.mrf.mxu0
    %679 = vdwg.mxu0
    %680 = vmatpush.bf16.msra.mxu0 %v629
    %681 = vmatpush.bf16.msra.mxu0 %v626
    %682 = vmatpush.bf16.msra.mxu0 %v623
    %683 = vmatpush.bf16.msra.mxu0 %v620
    %684 = vmatpush.bf16.msra.mxu0 %v617
    %685 = vmatpush.bf16.msra.mxu0 %v614
    %686 = vmatpush.bf16.msra.mxu0 %v611
    %687 = vmatpush.bf16.msra.mxu0 %v608
    %688 = vmatmul.bf16.gmra.mxu0 0
    %v689 = vpop.f32.mrf.mxu0
    %v690 = vadd.f32 0.0, %v689
    %v691 = vpop.f32.mrf.mxu0
    %692 = vdwg.mxu0
    %v693 = vadd.f32 %v523, %v664
    %v694 = vxor.u32 %v693, 2147483648
    %v695 = vmul.f32 %v694, 1.442695
    %v696 = vpow.pop %v695
    %v697 = vadd.f32 %v696, 1.0
    %v698 = vrcp.pop %v697
    %v699 = vmul.f32 %v697, %v698
    %v700 = vsub.f32 1.0, %v699
    %v701 = vmul.f32 %v698, %v700
    %v702 = vadd.f32 %v698, %v701
    %vm703 = vweird.f32 %v697
    %vm704 = vweird.f32 %v698
    %vm705 = vmor %vm703, %vm704
    %v706 = vsel %vm705, %v698, %v702
    %v707 = vand.u32 2147483647, %v697
    %vm708 = vcmp.eq.f32.partialorder %v707, 8.507059e+37
    %v709 = vand.u32 %v697, 2147483648
    %v710 = vor.u32 1.1754944e-38, %v709
    %v711 = vsel %vm708, %v710, %v706
    %v712 = vmul.f32 1.0, %v711
    %v713 = vadd.f32 %v524, %v677
    %v714 = vxor.u32 %v713, 2147483648
    %v715 = vmul.f32 %v714, 1.442695
    %v716 = vpow.pop %v715
    %v717 = vadd.f32 %v716, 1.0
    %v718 = vrcp.pop %v717
    %v719 = vmul.f32 %v717, %v718
    %v720 = vsub.f32 1.0, %v719
    %v721 = vmul.f32 %v718, %v720
    %v722 = vadd.f32 %v718, %v721
    %vm723 = vweird.f32 %v717
    %vm724 = vweird.f32 %v718
    %vm725 = vmor %vm723, %vm724
    %v726 = vsel %vm725, %v718, %v722
    %v727 = vand.u32 2147483647, %v717
    %vm728 = vcmp.eq.f32.partialorder %v727, 8.507059e+37
    %v729 = vand.u32 %v717, 2147483648
    %v730 = vor.u32 1.1754944e-38, %v729
    %v731 = vsel %vm728, %v730, %v726
    %v732 = vmul.f32 1.0, %v731
    %v734 = vperm.slane %v522, 0
    %v736 = vadd.f32 %v690, %v734
    %v737 = vmul.f32 %v712, %v736
    %v738 = vadd.f32 %v525, %v737
    %v739 = vtanh.pop %v738
    %v740 = vsub.f32 1.0, %v732
    %v741 = vmul.f32 %v740, %v739
    %v742 = vmul.f32 %v732, 0.0
    %v743 = vadd.f32 %v741, %v742
    %744 = vst [vmem:[#allocation8] sm:$0xff] %v743
    %s745 = scalar_lea.vmem [#allocation2], 24
    %v746 = vld [vmem:[%s745] sm:$0xff]
    %v747 = vld [vmem:[%s745 + $0x8] sm:$0xff]
    %v748 = vld [vmem:[%s745 + $0x10] sm:$0xff]
    %v749 = vpack.c.bf16 %v743, %v743
    %750 = vmatpush.bf16.msra.mxu0 %v627
    %751 = vmatpush.bf16.msra.mxu0 %v624
    %752 = vmatpush.bf16.msra.mxu0 %v621
    %753 = vmatpush.bf16.msra.mxu0 %v618
    %754 = vmatpush.bf16.msra.mxu0 %v615
    %755 = vmatpush.bf16.msra.mxu0 %v612
    %756 = vmatpush.bf16.msra.mxu0 %v609
    %757 = vmatpush.bf16.msra.mxu0 %v606
    %758 = vmatmul.bf16.gmra.mxu0 %v749
    %v759 = vpop.f32.mrf.mxu0
    %v760 = vadd.f32 0.0, %v759
    %v761 = vpop.f32.mrf.mxu0
    %762 = vdwg.mxu0
    %763 = vmatpush.bf16.msra.mxu0 %v628
    %764 = vmatpush.bf16.msra.mxu0 %v625
    %765 = vmatpush.bf16.msra.mxu0 %v622
    %766 = vmatpush.bf16.msra.mxu0 %v619
    %767 = vmatpush.bf16.msra.mxu0 %v616
    %768 = vmatpush.bf16.msra.mxu0 %v613
    %769 = vmatpush.bf16.msra.mxu0 %v610
    %770 = vmatpush.bf16.msra.mxu0 %v607
    %771 = vmatmul.bf16.gmra.mxu0 %v749
    %v772 = vpop.f32.mrf.mxu0
    %v773 = vadd.f32 0.0, %v772
    %v774 = vpop.f32.mrf.mxu0
    %775 = vdwg.mxu0
    %776 = vmatpush.bf16.msra.mxu0 %v629
    %777 = vmatpush.bf16.msra.mxu0 %v626
    %778 = vmatpush.bf16.msra.mxu0 %v623
    %779 = vmatpush.bf16.msra.mxu0 %v620
    %780 = vmatpush.bf16.msra.mxu0 %v617
    %781 = vmatpush.bf16.msra.mxu0 %v614
    %782 = vmatpush.bf16.msra.mxu0 %v611
    %783 = vmatpush.bf16.msra.mxu0 %v608
    %784 = vmatmul.bf16.gmra.mxu0 %v749
    %v785 = vpop.f32.mrf.mxu0
    %v786 = vadd.f32 0.0, %v785
    %v787 = vpop.f32.mrf.mxu0
    %788 = vdwg.mxu0
    %v789 = vadd.f32 %v746, %v760
    %v790 = vxor.u32 %v789, 2147483648
    %v791 = vmul.f32 %v790, 1.442695
    %v792 = vpow.pop %v791
    %v793 = vadd.f32 %v792, 1.0
    %v794 = vrcp.pop %v793
    %v795 = vmul.f32 %v793, %v794
    %v796 = vsub.f32 1.0, %v795
    %v797 = vmul.f32 %v794, %v796
    %v798 = vadd.f32 %v794, %v797
    %vm799 = vweird.f32 %v793
    %vm800 = vweird.f32 %v794
    %vm801 = vmor %vm799, %vm800
    %v802 = vsel %vm801, %v794, %v798
    %v803 = vand.u32 2147483647, %v793
    %vm804 = vcmp.eq.f32.partialorder %v803, 8.507059e+37
    %v805 = vand.u32 %v793, 2147483648
    %v806 = vor.u32 1.1754944e-38, %v805
    %v807 = vsel %vm804, %v806, %v802
    %v808 = vmul.f32 1.0, %v807
    %v809 = vadd.f32 %v747, %v773
    %v810 = vxor.u32 %v809, 2147483648
    %v811 = vmul.f32 %v810, 1.442695
    %v812 = vpow.pop %v811
    %v813 = vadd.f32 %v812, 1.0
    %v814 = vrcp.pop %v813
    %v815 = vmul.f32 %v813, %v814
    %v816 = vsub.f32 1.0, %v815
    %v817 = vmul.f32 %v814, %v816
    %v818 = vadd.f32 %v814, %v817
    %vm819 = vweird.f32 %v813
    %vm820 = vweird.f32 %v814
    %vm821 = vmor %vm819, %vm820
    %v822 = vsel %vm821, %v814, %v818
    %v823 = vand.u32 2147483647, %v813
    %vm824 = vcmp.eq.f32.partialorder %v823, 8.507059e+37
    %v825 = vand.u32 %v813, 2147483648
    %v826 = vor.u32 1.1754944e-38, %v825
    %v827 = vsel %vm824, %v826, %v822
    %v828 = vmul.f32 1.0, %v827
    %v829 = vadd.f32 %v786, %v734
    %v830 = vmul.f32 %v808, %v829
    %v831 = vadd.f32 %v748, %v830
    %v832 = vtanh.pop %v831
    %v833 = vsub.f32 1.0, %v828
    %v834 = vmul.f32 %v833, %v832
    %v835 = vmul.f32 %v828, %v743
    %v836 = vadd.f32 %v834, %v835
    %s837 = scalar_lea.vmem [#allocation8], 8
    %838 = vst [vmem:[%s837] sm:$0xff] %v836
    %s839 = scalar_lea.vmem [#allocation2], 48
    %v840 = vld [vmem:[%s839] sm:$0xff]
    %v841 = vld [vmem:[%s839 + $0x8] sm:$0xff]
    %v842 = vld [vmem:[%s839 + $0x10] sm:$0xff]
    %v843 = vpack.c.bf16 %v836, %v836
    %844 = vmatpush.bf16.msra.mxu0 %v627
    %845 = vmatpush.bf16.msra.mxu0 %v624
    %846 = vmatpush.bf16.msra.mxu0 %v621
    %847 = vmatpush.bf16.msra.mxu0 %v618
    %848 = vmatpush.bf16.msra.mxu0 %v615
    %849 = vmatpush.bf16.msra.mxu0 %v612
    %850 = vmatpush.bf16.msra.mxu0 %v609
    %851 = vmatpush.bf16.msra.mxu0 %v606
    %852 = vmatmul.bf16.gmra.mxu0 %v843
    %v853 = vpop.f32.mrf.mxu0
    %v854 = vadd.f32 0.0, %v853
    %v855 = vpop.f32.mrf.mxu0
    %856 = vdwg.mxu0
    %857 = vmatpush.bf16.msra.mxu0 %v628
    %858 = vmatpush.bf16.msra.mxu0 %v625
    %859 = vmatpush.bf16.msra.mxu0 %v622
    %860 = vmatpush.bf16.msra.mxu0 %v619
    %861 = vmatpush.bf16.msra.mxu0 %v616
    %862 = vmatpush.bf16.msra.mxu0 %v613
    %863 = vmatpush.bf16.msra.mxu0 %v610
    %864 = vmatpush.bf16.msra.mxu0 %v607
    %865 = vmatmul.bf16.gmra.mxu0 %v843
    %v866 = vpop.f32.mrf.mxu0
    %v867 = vadd.f32 0.0, %v866
    %v868 = vpop.f32.mrf.mxu0
    %869 = vdwg.mxu0
    %870 = vmatpush.bf16.msra.mxu0 %v629
    %871 = vmatpush.bf16.msra.mxu0 %v626
    %872 = vmatpush.bf16.msra.mxu0 %v623
    %873 = vmatpush.bf16.msra.mxu0 %v620
    %874 = vmatpush.bf16.msra.mxu0 %v617
    %875 = vmatpush.bf16.msra.mxu0 %v614
    %876 = vmatpush.bf16.msra.mxu0 %v611
    %877 = vmatpush.bf16.msra.mxu0 %v608
    %878 = vmatmul.bf16.gmra.mxu0 %v843
    %v879 = vpop.f32.mrf.mxu0
    %v880 = vadd.f32 0.0, %v879
    %v881 = vpop.f32.mrf.mxu0
    %882 = vdwg.mxu0
    %v883 = vadd.f32 %v840, %v854
    %v884 = vxor.u32 %v883, 2147483648
    %v885 = vmul.f32 %v884, 1.442695
    %v886 = vpow.pop %v885
    %v887 = vadd.f32 %v886, 1.0
    %v888 = vrcp.pop %v887
    %v889 = vmul.f32 %v887, %v888
    %v890 = vsub.f32 1.0, %v889
    %v891 = vmul.f32 %v888, %v890
    %v892 = vadd.f32 %v888, %v891
    %vm893 = vweird.f32 %v887
    %vm894 = vweird.f32 %v888
    %vm895 = vmor %vm893, %vm894
    %v896 = vsel %vm895, %v888, %v892
    %v897 = vand.u32 2147483647, %v887
    %vm898 = vcmp.eq.f32.partialorder %v897, 8.507059e+37
    %v899 = vand.u32 %v887, 2147483648
    %v900 = vor.u32 1.1754944e-38, %v899
    %v901 = vsel %vm898, %v900, %v896
    %v902 = vmul.f32 1.0, %v901
    %v903 = vadd.f32 %v841, %v867
    %v904 = vxor.u32 %v903, 2147483648
    %v905 = vmul.f32 %v904, 1.442695
    %v906 = vpow.pop %v905
    %v907 = vadd.f32 %v906, 1.0
    %v908 = vrcp.pop %v907
    %v909 = vmul.f32 %v907, %v908
    %v910 = vsub.f32 1.0, %v909
    %v911 = vmul.f32 %v908, %v910
    %v912 = vadd.f32 %v908, %v911
    %vm913 = vweird.f32 %v907
    %vm914 = vweird.f32 %v908
    %vm915 = vmor %vm913, %vm914
    %v916 = vsel %vm915, %v908, %v912
    %v917 = vand.u32 2147483647, %v907
    %vm918 = vcmp.eq.f32.partialorder %v917, 8.507059e+37
    %v919 = vand.u32 %v907, 2147483648
    %v920 = vor.u32 1.1754944e-38, %v919
    %v921 = vsel %vm918, %v920, %v916
    %v922 = vmul.f32 1.0, %v921
    %v923 = vadd.f32 %v880, %v734
    %v924 = vmul.f32 %v902, %v923
    %v925 = vadd.f32 %v842, %v924
    %v926 = vtanh.pop %v925
    %v927 = vsub.f32 1.0, %v922
    %v928 = vmul.f32 %v927, %v926
    %v929 = vmul.f32 %v922, %v836
    %v930 = vadd.f32 %v928, %v929
    %s931 = scalar_lea.vmem [#allocation8], 16
    %932 = vst [vmem:[%s931] sm:$0xff] %v930
    %s933 = scalar_lea.vmem [#allocation2], 72
    %v934 = vld [vmem:[%s933] sm:$0xff]
    %v935 = vld [vmem:[%s933 + $0x8] sm:$0xff]
    %v936 = vld [vmem:[%s933 + $0x10] sm:$0xff]
    %v937 = vpack.c.bf16 %v930, %v930
    %938 = vmatpush.bf16.msra.mxu0 %v627
    %939 = vmatpush.bf16.msra.mxu0 %v624
    %940 = vmatpush.bf16.msra.mxu0 %v621
    %941 = vmatpush.bf16.msra.mxu0 %v618
    %942 = vmatpush.bf16.msra.mxu0 %v615
    %943 = vmatpush.bf16.msra.mxu0 %v612
    %944 = vmatpush.bf16.msra.mxu0 %v609
    %945 = vmatpush.bf16.msra.mxu0 %v606
    %946 = vmatmul.bf16.gmra.mxu0 %v937
    %v947 = vpop.f32.mrf.mxu0
    %v948 = vadd.f32 0.0, %v947
    %v949 = vpop.f32.mrf.mxu0
    %950 = vdwg.mxu0
    %951 = vmatpush.bf16.msra.mxu0 %v628
    %952 = vmatpush.bf16.msra.mxu0 %v625
    %953 = vmatpush.bf16.msra.mxu0 %v622
    %954 = vmatpush.bf16.msra.mxu0 %v619
    %955 = vmatpush.bf16.msra.mxu0 %v616
    %956 = vmatpush.bf16.msra.mxu0 %v613
    %957 = vmatpush.bf16.msra.mxu0 %v610
    %958 = vmatpush.bf16.msra.mxu0 %v607
    %959 = vmatmul.bf16.gmra.mxu0 %v937
    %v960 = vpop.f32.mrf.mxu0
    %v961 = vadd.f32 0.0, %v960
    %v962 = vpop.f32.mrf.mxu0
    %963 = vdwg.mxu0
    %964 = vmatpush.bf16.msra.mxu0 %v629
    %965 = vmatpush.bf16.msra.mxu0 %v626
    %966 = vmatpush.bf16.msra.mxu0 %v623
    %967 = vmatpush.bf16.msra.mxu0 %v620
    %968 = vmatpush.bf16.msra.mxu0 %v617
    %969 = vmatpush.bf16.msra.mxu0 %v614
    %970 = vmatpush.bf16.msra.mxu0 %v611
    %971 = vmatpush.bf16.msra.mxu0 %v608
    %972 = vmatmul.bf16.gmra.mxu0 %v937
    %v973 = vpop.f32.mrf.mxu0
    %v974 = vadd.f32 0.0, %v973
    %v975 = vpop.f32.mrf.mxu0
    %976 = vdwg.mxu0
    %v977 = vadd.f32 %v934, %v948
    %v978 = vxor.u32 %v977, 2147483648
    %v979 = vmul.f32 %v978, 1.442695
    %v980 = vpow.pop %v979
    %v981 = vadd.f32 %v980, 1.0
    %v982 = vrcp.pop %v981
    %v983 = vmul.f32 %v981, %v982
    %v984 = vsub.f32 1.0, %v983
    %v985 = vmul.f32 %v982, %v984
    %v986 = vadd.f32 %v982, %v985
    %vm987 = vweird.f32 %v981
    %vm988 = vweird.f32 %v982
    %vm989 = vmor %vm987, %vm988
    %v990 = vsel %vm989, %v982, %v986
    %v991 = vand.u32 2147483647, %v981
    %vm992 = vcmp.eq.f32.partialorder %v991, 8.507059e+37
    %v993 = vand.u32 %v981, 2147483648
    %v994 = vor.u32 1.1754944e-38, %v993
    %v995 = vsel %vm992, %v994, %v990
    %v996 = vmul.f32 1.0, %v995
    %v997 = vadd.f32 %v935, %v961
    %v998 = vxor.u32 %v997, 2147483648
    %v999 = vmul.f32 %v998, 1.442695
    %v1000 = vpow.pop %v999
    %v1001 = vadd.f32 %v1000, 1.0
    %v1002 = vrcp.pop %v1001
    %v1003 = vmul.f32 %v1001, %v1002
    %v1004 = vsub.f32 1.0, %v1003
    %v1005 = vmul.f32 %v1002, %v1004
    %v1006 = vadd.f32 %v1002, %v1005
    %vm1007 = vweird.f32 %v1001
    %vm1008 = vweird.f32 %v1002
    %vm1009 = vmor %vm1007, %vm1008
    %v1010 = vsel %vm1009, %v1002, %v1006
    %v1011 = vand.u32 2147483647, %v1001
    %vm1012 = vcmp.eq.f32.partialorder %v1011, 8.507059e+37
    %v1013 = vand.u32 %v1001, 2147483648
    %v1014 = vor.u32 1.1754944e-38, %v1013
    %v1015 = vsel %vm1012, %v1014, %v1010
    %v1016 = vmul.f32 1.0, %v1015
    %v1017 = vadd.f32 %v974, %v734
    %v1018 = vmul.f32 %v996, %v1017
    %v1019 = vadd.f32 %v936, %v1018
    %v1020 = vtanh.pop %v1019
    %v1021 = vsub.f32 1.0, %v1016
    %v1022 = vmul.f32 %v1021, %v1020
    %v1023 = vmul.f32 %v1016, %v930
    %v1024 = vadd.f32 %v1022, %v1023
    %s1025 = scalar_lea.vmem [#allocation8], 24
    %1026 = vst [vmem:[%s1025] sm:$0xff] %v1024
    %s1027 = scalar_lea.vmem [#allocation2], 96
    %v1028 = vld [vmem:[%s1027] sm:$0xff]
    %v1029 = vld [vmem:[%s1027 + $0x8] sm:$0xff]
    %v1030 = vld [vmem:[%s1027 + $0x10] sm:$0xff]
    %v1031 = vpack.c.bf16 %v1024, %v1024
    %1032 = vmatpush.bf16.msra.mxu0 %v627
    %1033 = vmatpush.bf16.msra.mxu0 %v624
    %1034 = vmatpush.bf16.msra.mxu0 %v621
    %1035 = vmatpush.bf16.msra.mxu0 %v618
    %1036 = vmatpush.bf16.msra.mxu0 %v615
    %1037 = vmatpush.bf16.msra.mxu0 %v612
    %1038 = vmatpush.bf16.msra.mxu0 %v609
    %1039 = vmatpush.bf16.msra.mxu0 %v606
    %1040 = vmatmul.bf16.gmra.mxu0 %v1031
    %v1041 = vpop.f32.mrf.mxu0
    %v1042 = vadd.f32 0.0, %v1041
    %v1043 = vpop.f32.mrf.mxu0
    %1044 = vdwg.mxu0
    %1045 = vmatpush.bf16.msra.mxu0 %v628
    %1046 = vmatpush.bf16.msra.mxu0 %v625
    %1047 = vmatpush.bf16.msra.mxu0 %v622
    %1048 = vmatpush.bf16.msra.mxu0 %v619
    %1049 = vmatpush.bf16.msra.mxu0 %v616
    %1050 = vmatpush.bf16.msra.mxu0 %v613
    %1051 = vmatpush.bf16.msra.mxu0 %v610
    %1052 = vmatpush.bf16.msra.mxu0 %v607
    %1053 = vmatmul.bf16.gmra.mxu0 %v1031
    %v1054 = vpop.f32.mrf.mxu0
    %v1055 = vadd.f32 0.0, %v1054
    %v1056 = vpop.f32.mrf.mxu0
    %1057 = vdwg.mxu0
    %1058 = vmatpush.bf16.msra.mxu0 %v629
    %1059 = vmatpush.bf16.msra.mxu0 %v626
    %1060 = vmatpush.bf16.msra.mxu0 %v623
    %1061 = vmatpush.bf16.msra.mxu0 %v620
    %1062 = vmatpush.bf16.msra.mxu0 %v617
    %1063 = vmatpush.bf16.msra.mxu0 %v614
    %1064 = vmatpush.bf16.msra.mxu0 %v611
    %1065 = vmatpush.bf16.msra.mxu0 %v608
    %1066 = vmatmul.bf16.gmra.mxu0 %v1031
    %v1067 = vpop.f32.mrf.mxu0
    %v1068 = vadd.f32 0.0, %v1067
    %v1069 = vpop.f32.mrf.mxu0
    %1070 = vdwg.mxu0
    %v1071 = vadd.f32 %v1028, %v1042
    %v1072 = vxor.u32 %v1071, 2147483648
    %v1073 = vmul.f32 %v1072, 1.442695
    %v1074 = vpow.pop %v1073
    %v1075 = vadd.f32 %v1074, 1.0
    %v1076 = vrcp.pop %v1075
    %v1077 = vmul.f32 %v1075, %v1076
    %v1078 = vsub.f32 1.0, %v1077
    %v1079 = vmul.f32 %v1076, %v1078
    %v1080 = vadd.f32 %v1076, %v1079
    %vm1081 = vweird.f32 %v1075
    %vm1082 = vweird.f32 %v1076
    %vm1083 = vmor %vm1081, %vm1082
    %v1084 = vsel %vm1083, %v1076, %v1080
    %v1085 = vand.u32 2147483647, %v1075
    %vm1086 = vcmp.eq.f32.partialorder %v1085, 8.507059e+37
    %v1087 = vand.u32 %v1075, 2147483648
    %v1088 = vor.u32 1.1754944e-38, %v1087
    %v1089 = vsel %vm1086, %v1088, %v1084
    %v1090 = vmul.f32 1.0, %v1089
    %v1091 = vadd.f32 %v1029, %v1055
    %v1092 = vxor.u32 %v1091, 2147483648
    %v1093 = vmul.f32 %v1092, 1.442695
    %v1094 = vpow.pop %v1093
    %v1095 = vadd.f32 %v1094, 1.0
    %v1096 = vrcp.pop %v1095
    %v1097 = vmul.f32 %v1095, %v1096
    %v1098 = vsub.f32 1.0, %v1097
    %v1099 = vmul.f32 %v1096, %v1098
    %v1100 = vadd.f32 %v1096, %v1099
    %vm1101 = vweird.f32 %v1095
    %vm1102 = vweird.f32 %v1096
    %vm1103 = vmor %vm1101, %vm1102
    %v1104 = vsel %vm1103, %v1096, %v1100
    %v1105 = vand.u32 2147483647, %v1095
    %vm1106 = vcmp.eq.f32.partialorder %v1105, 8.507059e+37
    %v1107 = vand.u32 %v1095, 2147483648
    %v1108 = vor.u32 1.1754944e-38, %v1107
    %v1109 = vsel %vm1106, %v1108, %v1104
    %v1110 = vmul.f32 1.0, %v1109
    %v1111 = vadd.f32 %v1068, %v734
    %v1112 = vmul.f32 %v1090, %v1111
    %v1113 = vadd.f32 %v1030, %v1112
    %v1114 = vtanh.pop %v1113
    %v1115 = vsub.f32 1.0, %v1110
    %v1116 = vmul.f32 %v1115, %v1114
    %v1117 = vmul.f32 %v1110, %v1024
    %v1118 = vadd.f32 %v1116, %v1117
    %s1119 = scalar_lea.vmem [#allocation8], 32
    %1120 = vst [vmem:[%s1119] sm:$0xff] %v1118
    %s1121 = scalar_lea.vmem [#allocation2], 120
    %v1122 = vld [vmem:[%s1121] sm:$0xff]
    %v1123 = vld [vmem:[%s1121 + $0x8] sm:$0xff]
    %v1124 = vld [vmem:[%s1121 + $0x10] sm:$0xff]
    %v1125 = vpack.c.bf16 %v1118, %v1118
    %1126 = vmatpush.bf16.msra.mxu0 %v627
    %1127 = vmatpush.bf16.msra.mxu0 %v624
    %1128 = vmatpush.bf16.msra.mxu0 %v621
    %1129 = vmatpush.bf16.msra.mxu0 %v618
    %1130 = vmatpush.bf16.msra.mxu0 %v615
    %1131 = vmatpush.bf16.msra.mxu0 %v612
    %1132 = vmatpush.bf16.msra.mxu0 %v609
    %1133 = vmatpush.bf16.msra.mxu0 %v606
    %1134 = vmatmul.bf16.gmra.mxu0 %v1125
    %v1135 = vpop.f32.mrf.mxu0
    %v1136 = vadd.f32 0.0, %v1135
    %v1137 = vpop.f32.mrf.mxu0
    %1138 = vdwg.mxu0
    %1139 = vmatpush.bf16.msra.mxu0 %v628
    %1140 = vmatpush.bf16.msra.mxu0 %v625
    %1141 = vmatpush.bf16.msra.mxu0 %v622
    %1142 = vmatpush.bf16.msra.mxu0 %v619
    %1143 = vmatpush.bf16.msra.mxu0 %v616
    %1144 = vmatpush.bf16.msra.mxu0 %v613
    %1145 = vmatpush.bf16.msra.mxu0 %v610
    %1146 = vmatpush.bf16.msra.mxu0 %v607
    %1147 = vmatmul.bf16.gmra.mxu0 %v1125
    %v1148 = vpop.f32.mrf.mxu0
    %v1149 = vadd.f32 0.0, %v1148
    %v1150 = vpop.f32.mrf.mxu0
    %1151 = vdwg.mxu0
    %1152 = vmatpush.bf16.msra.mxu0 %v629
    %1153 = vmatpush.bf16.msra.mxu0 %v626
    %1154 = vmatpush.bf16.msra.mxu0 %v623
    %1155 = vmatpush.bf16.msra.mxu0 %v620
    %1156 = vmatpush.bf16.msra.mxu0 %v617
    %1157 = vmatpush.bf16.msra.mxu0 %v614
    %1158 = vmatpush.bf16.msra.mxu0 %v611
    %1159 = vmatpush.bf16.msra.mxu0 %v608
    %1160 = vmatmul.bf16.gmra.mxu0 %v1125
    %v1161 = vpop.f32.mrf.mxu0
    %v1162 = vadd.f32 0.0, %v1161
    %v1163 = vpop.f32.mrf.mxu0
    %1164 = vdwg.mxu0
    %v1165 = vadd.f32 %v1122, %v1136
    %v1166 = vxor.u32 %v1165, 2147483648
    %v1167 = vmul.f32 %v1166, 1.442695
    %v1168 = vpow.pop %v1167
    %v1169 = vadd.f32 %v1168, 1.0
    %v1170 = vrcp.pop %v1169
    %v1171 = vmul.f32 %v1169, %v1170
    %v1172 = vsub.f32 1.0, %v1171
    %v1173 = vmul.f32 %v1170, %v1172
    %v1174 = vadd.f32 %v1170, %v1173
    %vm1175 = vweird.f32 %v1169
    %vm1176 = vweird.f32 %v1170
    %vm1177 = vmor %vm1175, %vm1176
    %v1178 = vsel %vm1177, %v1170, %v1174
    %v1179 = vand.u32 2147483647, %v1169
    %vm1180 = vcmp.eq.f32.partialorder %v1179, 8.507059e+37
    %v1181 = vand.u32 %v1169, 2147483648
    %v1182 = vor.u32 1.1754944e-38, %v1181
    %v1183 = vsel %vm1180, %v1182, %v1178
    %v1184 = vmul.f32 1.0, %v1183
    %v1185 = vadd.f32 %v1123, %v1149
    %v1186 = vxor.u32 %v1185, 2147483648
    %v1187 = vmul.f32 %v1186, 1.442695
    %v1188 = vpow.pop %v1187
    %v1189 = vadd.f32 %v1188, 1.0
    %v1190 = vrcp.pop %v1189
    %v1191 = vmul.f32 %v1189, %v1190
    %v1192 = vsub.f32 1.0, %v1191
    %v1193 = vmul.f32 %v1190, %v1192
    %v1194 = vadd.f32 %v1190, %v1193
    %vm1195 = vweird.f32 %v1189
    %vm1196 = vweird.f32 %v1190
    %vm1197 = vmor %vm1195, %vm1196
    %v1198 = vsel %vm1197, %v1190, %v1194
    %v1199 = vand.u32 2147483647, %v1189
    %vm1200 = vcmp.eq.f32.partialorder %v1199, 8.507059e+37
    %v1201 = vand.u32 %v1189, 2147483648
    %v1202 = vor.u32 1.1754944e-38, %v1201
    %v1203 = vsel %vm1200, %v1202, %v1198
    %v1204 = vmul.f32 1.0, %v1203
    %v1205 = vadd.f32 %v1162, %v734
    %v1206 = vmul.f32 %v1184, %v1205
    %v1207 = vadd.f32 %v1124, %v1206
    %v1208 = vtanh.pop %v1207
    %v1209 = vsub.f32 1.0, %v1204
    %v1210 = vmul.f32 %v1209, %v1208
    %v1211 = vmul.f32 %v1204, %v1118
    %v1212 = vadd.f32 %v1210, %v1211
    %s1213 = scalar_lea.vmem [#allocation8], 40
    %1214 = vst [vmem:[%s1213] sm:$0xff] %v1212
    %s1215 = scalar_lea.vmem [#allocation2], 144
    %v1216 = vld [vmem:[%s1215] sm:$0xff]
    %v1217 = vld [vmem:[%s1215 + $0x8] sm:$0xff]
    %v1218 = vld [vmem:[%s1215 + $0x10] sm:$0xff]
    %v1219 = vpack.c.bf16 %v1212, %v1212
    %1220 = vmatpush.bf16.msra.mxu0 %v627
    %1221 = vmatpush.bf16.msra.mxu0 %v624
    %1222 = vmatpush.bf16.msra.mxu0 %v621
    %1223 = vmatpush.bf16.msra.mxu0 %v618
    %1224 = vmatpush.bf16.msra.mxu0 %v615
    %1225 = vmatpush.bf16.msra.mxu0 %v612
    %1226 = vmatpush.bf16.msra.mxu0 %v609
    %1227 = vmatpush.bf16.msra.mxu0 %v606
    %1228 = vmatmul.bf16.gmra.mxu0 %v1219
    %v1229 = vpop.f32.mrf.mxu0
    %v1230 = vadd.f32 0.0, %v1229
    %v1231 = vpop.f32.mrf.mxu0
    %1232 = vdwg.mxu0
    %1233 = vmatpush.bf16.msra.mxu0 %v628
    %1234 = vmatpush.bf16.msra.mxu0 %v625
    %1235 = vmatpush.bf16.msra.mxu0 %v622
    %1236 = vmatpush.bf16.msra.mxu0 %v619
    %1237 = vmatpush.bf16.msra.mxu0 %v616
    %1238 = vmatpush.bf16.msra.mxu0 %v613
    %1239 = vmatpush.bf16.msra.mxu0 %v610
    %1240 = vmatpush.bf16.msra.mxu0 %v607
    %1241 = vmatmul.bf16.gmra.mxu0 %v1219
    %v1242 = vpop.f32.mrf.mxu0
    %v1243 = vadd.f32 0.0, %v1242
    %v1244 = vpop.f32.mrf.mxu0
    %1245 = vdwg.mxu0
    %1246 = vmatpush.bf16.msra.mxu0 %v629
    %1247 = vmatpush.bf16.msra.mxu0 %v626
    %1248 = vmatpush.bf16.msra.mxu0 %v623
    %1249 = vmatpush.bf16.msra.mxu0 %v620
    %1250 = vmatpush.bf16.msra.mxu0 %v617
    %1251 = vmatpush.bf16.msra.mxu0 %v614
    %1252 = vmatpush.bf16.msra.mxu0 %v611
    %1253 = vmatpush.bf16.msra.mxu0 %v608
    %1254 = vmatmul.bf16.gmra.mxu0 %v1219
    %v1255 = vpop.f32.mrf.mxu0
    %v1256 = vadd.f32 0.0, %v1255
    %v1257 = vpop.f32.mrf.mxu0
    %1258 = vdwg.mxu0
    %v1259 = vadd.f32 %v1216, %v1230
    %v1260 = vxor.u32 %v1259, 2147483648
    %v1261 = vmul.f32 %v1260, 1.442695
    %v1262 = vpow.pop %v1261
    %v1263 = vadd.f32 %v1262, 1.0
    %v1264 = vrcp.pop %v1263
    %v1265 = vmul.f32 %v1263, %v1264
    %v1266 = vsub.f32 1.0, %v1265
    %v1267 = vmul.f32 %v1264, %v1266
    %v1268 = vadd.f32 %v1264, %v1267
    %vm1269 = vweird.f32 %v1263
    %vm1270 = vweird.f32 %v1264
    %vm1271 = vmor %vm1269, %vm1270
    %v1272 = vsel %vm1271, %v1264, %v1268
    %v1273 = vand.u32 2147483647, %v1263
    %vm1274 = vcmp.eq.f32.partialorder %v1273, 8.507059e+37
    %v1275 = vand.u32 %v1263, 2147483648
    %v1276 = vor.u32 1.1754944e-38, %v1275
    %v1277 = vsel %vm1274, %v1276, %v1272
    %v1278 = vmul.f32 1.0, %v1277
    %v1279 = vadd.f32 %v1217, %v1243
    %v1280 = vxor.u32 %v1279, 2147483648
    %v1281 = vmul.f32 %v1280, 1.442695
    %v1282 = vpow.pop %v1281
    %v1283 = vadd.f32 %v1282, 1.0
    %v1284 = vrcp.pop %v1283
    %v1285 = vmul.f32 %v1283, %v1284
    %v1286 = vsub.f32 1.0, %v1285
    %v1287 = vmul.f32 %v1284, %v1286
    %v1288 = vadd.f32 %v1284, %v1287
    %vm1289 = vweird.f32 %v1283
    %vm1290 = vweird.f32 %v1284
    %vm1291 = vmor %vm1289, %vm1290
    %v1292 = vsel %vm1291, %v1284, %v1288
    %v1293 = vand.u32 2147483647, %v1283
    %vm1294 = vcmp.eq.f32.partialorder %v1293, 8.507059e+37
    %v1295 = vand.u32 %v1283, 2147483648
    %v1296 = vor.u32 1.1754944e-38, %v1295
    %v1297 = vsel %vm1294, %v1296, %v1292
    %v1298 = vmul.f32 1.0, %v1297
    %v1299 = vadd.f32 %v1256, %v734
    %v1300 = vmul.f32 %v1278, %v1299
    %v1301 = vadd.f32 %v1218, %v1300
    %v1302 = vtanh.pop %v1301
    %v1303 = vsub.f32 1.0, %v1298
    %v1304 = vmul.f32 %v1303, %v1302
    %v1305 = vmul.f32 %v1298, %v1212
    %v1306 = vadd.f32 %v1304, %v1305
    %s1307 = scalar_lea.vmem [#allocation8], 48
    %1308 = vst [vmem:[%s1307] sm:$0xff] %v1306
    %s1309 = scalar_lea.vmem [#allocation2], 168
    %v1310 = vld [vmem:[%s1309] sm:$0xff]
    %v1311 = vld [vmem:[%s1309 + $0x8] sm:$0xff]
    %v1312 = vld [vmem:[%s1309 + $0x10] sm:$0xff]
    %v1313 = vpack.c.bf16 %v1306, %v1306
    %1314 = vmatpush.bf16.msra.mxu0 %v627
    %1315 = vmatpush.bf16.msra.mxu0 %v624
    %1316 = vmatpush.bf16.msra.mxu0 %v621
    %1317 = vmatpush.bf16.msra.mxu0 %v618
    %1318 = vmatpush.bf16.msra.mxu0 %v615
    %1319 = vmatpush.bf16.msra.mxu0 %v612
    %1320 = vmatpush.bf16.msra.mxu0 %v609
    %1321 = vmatpush.bf16.msra.mxu0 %v606
    %1322 = vmatmul.bf16.gmra.mxu0 %v1313
    %v1323 = vpop.f32.mrf.mxu0
    %v1324 = vadd.f32 0.0, %v1323
    %v1325 = vpop.f32.mrf.mxu0
    %1326 = vdwg.mxu0
    %1327 = vmatpush.bf16.msra.mxu0 %v628
    %1328 = vmatpush.bf16.msra.mxu0 %v625
    %1329 = vmatpush.bf16.msra.mxu0 %v622
    %1330 = vmatpush.bf16.msra.mxu0 %v619
    %1331 = vmatpush.bf16.msra.mxu0 %v616
    %1332 = vmatpush.bf16.msra.mxu0 %v613
    %1333 = vmatpush.bf16.msra.mxu0 %v610
    %1334 = vmatpush.bf16.msra.mxu0 %v607
    %1335 = vmatmul.bf16.gmra.mxu0 %v1313
    %v1336 = vpop.f32.mrf.mxu0
    %v1337 = vadd.f32 0.0, %v1336
    %v1338 = vpop.f32.mrf.mxu0
    %1339 = vdwg.mxu0
    %1340 = vmatpush.bf16.msra.mxu0 %v629
    %1341 = vmatpush.bf16.msra.mxu0 %v626
    %1342 = vmatpush.bf16.msra.mxu0 %v623
    %1343 = vmatpush.bf16.msra.mxu0 %v620
    %1344 = vmatpush.bf16.msra.mxu0 %v617
    %1345 = vmatpush.bf16.msra.mxu0 %v614
    %1346 = vmatpush.bf16.msra.mxu0 %v611
    %1347 = vmatpush.bf16.msra.mxu0 %v608
    %1348 = vmatmul.bf16.gmra.mxu0 %v1313
    %v1349 = vpop.f32.mrf.mxu0
    %v1350 = vadd.f32 0.0, %v1349
    %v1351 = vpop.f32.mrf.mxu0
    %1352 = vdwg.mxu0
    %v1353 = vadd.f32 %v1310, %v1324
    %v1354 = vxor.u32 %v1353, 2147483648
    %v1355 = vmul.f32 %v1354, 1.442695
    %v1356 = vpow.pop %v1355
    %v1357 = vadd.f32 %v1356, 1.0
    %v1358 = vrcp.pop %v1357
    %v1359 = vmul.f32 %v1357, %v1358
    %v1360 = vsub.f32 1.0, %v1359
    %v1361 = vmul.f32 %v1358, %v1360
    %v1362 = vadd.f32 %v1358, %v1361
    %vm1363 = vweird.f32 %v1357
    %vm1364 = vweird.f32 %v1358
    %vm1365 = vmor %vm1363, %vm1364
    %v1366 = vsel %vm1365, %v1358, %v1362
    %v1367 = vand.u32 2147483647, %v1357
    %vm1368 = vcmp.eq.f32.partialorder %v1367, 8.507059e+37
    %v1369 = vand.u32 %v1357, 2147483648
    %v1370 = vor.u32 1.1754944e-38, %v1369
    %v1371 = vsel %vm1368, %v1370, %v1366
    %v1372 = vmul.f32 1.0, %v1371
    %v1373 = vadd.f32 %v1311, %v1337
    %v1374 = vxor.u32 %v1373, 2147483648
    %v1375 = vmul.f32 %v1374, 1.442695
    %v1376 = vpow.pop %v1375
    %v1377 = vadd.f32 %v1376, 1.0
    %v1378 = vrcp.pop %v1377
    %v1379 = vmul.f32 %v1377, %v1378
    %v1380 = vsub.f32 1.0, %v1379
    %v1381 = vmul.f32 %v1378, %v1380
    %v1382 = vadd.f32 %v1378, %v1381
    %vm1383 = vweird.f32 %v1377
    %vm1384 = vweird.f32 %v1378
    %vm1385 = vmor %vm1383, %vm1384
    %v1386 = vsel %vm1385, %v1378, %v1382
    %v1387 = vand.u32 2147483647, %v1377
    %vm1388 = vcmp.eq.f32.partialorder %v1387, 8.507059e+37
    %v1389 = vand.u32 %v1377, 2147483648
    %v1390 = vor.u32 1.1754944e-38, %v1389
    %v1391 = vsel %vm1388, %v1390, %v1386
    %v1392 = vmul.f32 1.0, %v1391
    %v1393 = vadd.f32 %v1350, %v734
    %v1394 = vmul.f32 %v1372, %v1393
    %v1395 = vadd.f32 %v1312, %v1394
    %v1396 = vtanh.pop %v1395
    %v1397 = vsub.f32 1.0, %v1392
    %v1398 = vmul.f32 %v1397, %v1396
    %v1399 = vmul.f32 %v1392, %v1306
    %v1400 = vadd.f32 %v1398, %v1399
    %s1401 = scalar_lea.vmem [#allocation8], 56
    %1402 = vst [vmem:[%s1401] sm:$0xff] %v1400
    %1403 = vst [vmem:[#allocation9] sm:$0xff] %v1400
    // Predicated region
    $region34: #{tpu_custom_call.1} parent=1 // pred_check
      _
    $region35: #{tpu_custom_call.1} parent=1 // pred_check_branch
      %1405 = sbr.rel (0) target = $region37
    $region36: #{tpu_custom_call.1} parent=1 // pred_region
      %1407 = vsyncadd [#allocation5], 0
      %s1408 = sshll.u32 [#allocation8], 4
      %s1409 = int_to_ptr.vmem [resolvable:$true] %s1408
      %s1410 = sshll.u32 %s6, 4
      %s1411 = int_to_ptr.hbm [resolvable:$true] %s1410
      %1416 = dma.vmem_to_hbm [thread:$0]  %s1409, 1024, %s1411, [#allocation5], 128, 128, 8
    $region37: #{tpu_custom_call.1} parent=1 // pred_fallthru
      _
    // Predicated region
    $region38: #{tpu_custom_call.1} parent=1 // pred_check
      _
    $region39: #{tpu_custom_call.1} parent=1 // pred_check_branch
      %1418 = sbr.rel (0) target = $region41
    $region40: #{tpu_custom_call.1} parent=1 // pred_region
      %1420 = vsyncadd [#allocation10], 0
      %s1422 = sshll.u32 [#allocation9], 4
      %s1423 = int_to_ptr.vmem [resolvable:$true] %s1422
      %s1424 = sshll.u32 %s7, 4
      %s1425 = int_to_ptr.hbm [resolvable:$true] %s1424
      %1427 = dma.vmem_to_hbm [thread:$0]  %s1423, 128, %s1425, [#allocation10]
    $region41: #{tpu_custom_call.1} parent=1 // pred_fallthru
      _
    // Predicated region
    $region42: #{tpu_custom_call.1} parent=1 // pred_check
      _
    $region43: #{tpu_custom_call.1} parent=1 // pred_check_branch
      %1429 = sbr.rel (0) target = $region45
    $region44: #{tpu_custom_call.1} parent=1 // pred_region
      %1431 = dma.done [#allocation5], 1024
    $region45: #{tpu_custom_call.1} parent=1 // pred_fallthru
      _
    // Predicated region
    $region46: #{tpu_custom_call.1} parent=1 // pred_check
      _
    $region47: #{tpu_custom_call.1} parent=1 // pred_check_branch
      %1433 = sbr.rel (0) target = $region49
    $region48: #{tpu_custom_call.1} parent=1 // pred_region
      %1435 = dma.done [#allocation10], 128
    $region49: #{tpu_custom_call.1} parent=1 // pred_fallthru
      _
    %1436 = vsyncpa [#allocation4], 1
    %1437 = vsyncpa [#allocation7], 1
    %1438 = vsyncpa [#allocation5], 1
    %1439 = vsyncpa [#allocation10], 1

</llo_original>
